<compile_context>
chip_gen: v7x
topology: tpu7x:2x2x1
jax: 0.10.0
libtpu: 0.0.40
codegen_flags: <defaults>
</compile_context>

<pallas_src>
import jax
import jax.numpy as jnp
import numpy as np
from jax import lax
from jax.experimental import pallas as pl
from jax.experimental.pallas import tpu as pltpu

# ---- module hyper-parameters (small, deterministic, TPU-friendly) ----
S = 16            # sequence length (tokens)
B = 2             # batch
C = 128           # embed dim c  (128 so the lane axis is fully dense)
NH = 4            # num_heads
DH = C // NH      # head dim
N = B * S         # total tokens
SCALE = 1.0 / float(np.sqrt(DH))


def transformer_layer_kernel(x_ref, wqkv_ref, bqkv_ref, wout_ref, bout_ref,
                             wfc1_ref, wfc2_ref, o_ref, cat_ref):
    # x_ref   : (N, C)   tokens, batch-major rows (row = b*S + s)
    # wqkv_ref: (C, 3C)  fused [ (Wq^T Win_q^T)*scale | Wk^T Win_k^T | Wv^T Win_v^T ]
    # bqkv_ref: (1, 3C)  fused in_proj bias (Q third pre-scaled)
    # wout_ref: (C, C)   MHA out_proj.weight^T     bout_ref: (1, C) out_proj bias
    # wfc1_ref/wfc2_ref : (C, C) fc1/fc2 weight^T
    # o_ref   : (N, C)   output (aliases x's HBM buffer)
    # cat_ref : (N, C)   VMEM scratch: lane-contiguous per-head attention outputs
    x = x_ref[...]

    # ---- 6 projections (q/k/v Linears + MHA in_proj) in ONE MXU dot ----
    qkv = jnp.dot(x, wqkv_ref[...], preferred_element_type=jnp.float32) + bqkv_ref[...]

    # ---- per-head scaled-dot-product attention ----
    for h in range(NH):
        lo = h * DH
        q_h = qkv[:, lo:lo + DH].reshape(B, S, DH)            # already * 1/sqrt(DH)
        k_h = qkv[:, C + lo:C + lo + DH].reshape(B, S, DH)
        v_h = qkv[:, 2 * C + lo:2 * C + lo + DH].reshape(B, S, DH)

        s = jnp.einsum('bqd,bkd->bqk', q_h, k_h,
                       preferred_element_type=jnp.float32)    # (B, S, S)
        s = s - jnp.max(s, axis=-1, keepdims=True)
        e = jnp.exp(s)
        p = e * pl.reciprocal(jnp.sum(e, axis=-1, keepdims=True), approx=True)
        o_h = jnp.einsum('bqk,bkd->bqd', p, v_h,
                         preferred_element_type=jnp.float32)  # (B, S, DH)
        cat_ref[:, lo:lo + DH] = o_h.reshape(N, DH)           # lane-contiguous concat

    # ---- single out_proj dot (K = C) + bias + attention residual ----
    attn = jnp.dot(cat_ref[...], wout_ref[...], preferred_element_type=jnp.float32)
    res1 = attn + bout_ref[...] + x

    # ---- feed-forward fc2(fc1(.)) + residual ----
    h1 = jnp.dot(res1, wfc1_ref[...], preferred_element_type=jnp.float32)
    o_ref[...] = jnp.dot(h1, wfc2_ref[...], preferred_element_type=jnp.float32) + res1


@jax.jit
def transformer_layer_pallas(x, wq, wk, wv, w_in, b_in, w_out, b_out, w_fc1, w_fc2):
    """x: (S, B, C) (PyTorch MHA layout, batch_first=False). Weights in PyTorch
    Linear layout (out, in); w_in/b_in are MHA in_proj_weight/bias (3C, C)/(3C,)."""
    HI = lax.Precision.HIGHEST
    # lane-dense batch-major 2-D token layout
    x2d = jnp.transpose(x, (1, 0, 2)).reshape(N, C)

    # Fuse q/k/v Linear with MHA in_proj, folding the attention scale into Q:
    #   q_proj*scale = x @ (Wq^T @ Win_q^T * scale) + b_in_q * scale, etc.
    wq_f = jnp.dot(wq.T, w_in[:C].T, precision=HI) * SCALE
    wk_f = jnp.dot(wk.T, w_in[C:2 * C].T, precision=HI)
    wv_f = jnp.dot(wv.T, w_in[2 * C:].T, precision=HI)
    wqkv = jnp.concatenate([wq_f, wk_f, wv_f], axis=1)                    # (C, 3C)
    bqkv = jnp.concatenate([b_in[:C] * SCALE, b_in[C:2 * C],
                            b_in[2 * C:]]).reshape(1, 3 * C)              # (1, 3C)

    vmem = pltpu.MemorySpace.VMEM
    out2d = pl.pallas_call(
        transformer_layer_kernel,
        out_shape=jax.ShapeDtypeStruct((N, C), jnp.float32),
        in_specs=[pl.BlockSpec(memory_space=vmem)] * 7,
        out_specs=pl.BlockSpec(memory_space=vmem),
        scratch_shapes=[pltpu.VMEM((N, C), jnp.float32)],
        input_output_aliases={0: 0},          # output reuses x2d's HBM buffer
    )(x2d, wqkv, bqkv, w_out.T, b_out.reshape(1, C), w_fc1.T, w_fc2.T)

    return jnp.transpose(out2d.reshape(B, S, C), (1, 0, 2))               # (S, B, C)


def transformer_layer_reference(x, wq, wk, wv, w_in, b_in, w_out, b_out, w_fc1, w_fc2):
    """Pure-JAX reference matching the PyTorch forward semantics (f32)."""
    P = lax.Precision.HIGHEST

    def lin(t, w, b=None):
        y = jnp.einsum('sbc,dc->sbd', t, w, precision=P)
        return y if b is None else y + b

    q = lin(x, wq); k = lin(x, wk); v = lin(x, wv)                        # self.q/k/v
    qp = lin(q, w_in[:C], b_in[:C])                                       # MHA in_proj
    kp = lin(k, w_in[C:2 * C], b_in[C:2 * C])
    vp = lin(v, w_in[2 * C:], b_in[2 * C:])

    def to_heads(t):   # (S, B, C) -> (B*NH, S, DH), matching torch's view/transpose
        return jnp.transpose(t.reshape(S, B * NH, DH), (1, 0, 2))

    Q, K, V = to_heads(qp), to_heads(kp), to_heads(vp)
    scores = jnp.einsum('nqd,nkd->nqk', Q, K, precision=P) * SCALE
    p = jax.nn.softmax(scores, axis=-1)
    a = jnp.einsum('nqk,nkd->nqd', p, V, precision=P)                     # (B*NH, S, DH)
    a = jnp.transpose(a, (1, 0, 2)).reshape(S, B, C)

    out = lin(a, w_out, b_out) + x                                        # attn residual
    out = lin(lin(out, w_fc1), w_fc2) + out                               # FFN residual
    return out


if __name__ == "__main__":
    key = jax.random.PRNGKey(0)
    ks = jax.random.split(key, 10)
    wscale = 1.0 / np.sqrt(C)

    x = jax.random.normal(ks[0], (S, B, C), dtype=jnp.float32)
    wq = wscale * jax.random.normal(ks[1], (C, C), dtype=jnp.float32)
    wk = wscale * jax.random.normal(ks[2], (C, C), dtype=jnp.float32)
    wv = wscale * jax.random.normal(ks[3], (C, C), dtype=jnp.float32)
    w_in = wscale * jax.random.normal(ks[4], (3 * C, C), dtype=jnp.float32)
    b_in = 0.1 * jax.random.normal(ks[5], (3 * C,), dtype=jnp.float32)
    w_out = wscale * jax.random.normal(ks[6], (C, C), dtype=jnp.float32)
    b_out = 0.1 * jax.random.normal(ks[7], (C,), dtype=jnp.float32)
    w_fc1 = wscale * jax.random.normal(ks[8], (C, C), dtype=jnp.float32)
    w_fc2 = wscale * jax.random.normal(ks[9], (C, C), dtype=jnp.float32)

    args = (x, wq, wk, wv, w_in, b_in, w_out, b_out, w_fc1, w_fc2)
    out = jax.block_until_ready(transformer_layer_pallas(*args))
    ref = jax.block_until_ready(transformer_layer_reference(*args))

    assert out.shape == (S, B, C) and out.dtype == jnp.float32
    np.testing.assert_allclose(np.asarray(out), np.asarray(ref), rtol=2e-2, atol=2e-2)
    print("KERNEL_OK")
</pallas_src>

<mosaic_0001>
module attributes {stable_mosaic.version = 11 : i64} {
  func.func @transformer_layer_kernel(%arg0: memref<32x128xf32, #tpu.memory_space<vmem>>, %arg1: memref<128x384xf32, #tpu.memory_space<vmem>>, %arg2: memref<1x384xf32, #tpu.memory_space<vmem>>, %arg3: memref<128x128xf32, #tpu.memory_space<vmem>>, %arg4: memref<1x128xf32, #tpu.memory_space<vmem>>, %arg5: memref<128x128xf32, #tpu.memory_space<vmem>>, %arg6: memref<128x128xf32, #tpu.memory_space<vmem>>, %arg7: memref<32x128xf32, #tpu.memory_space<vmem>>, %arg8: memref<32x128xf32, #tpu.memory_space<vmem>>) attributes {dimension_semantics = [], scalar_prefetch = 0 : i64, scratch_operands = 1 : i64, tpu.core_type = #tpu.core_type<tc>} {
    %c0 = arith.constant 0 : index
    %c0_0 = arith.constant 0 : index
    %0 = vector.load %arg0[%c0, %c0_0] : memref<32x128xf32, #tpu.memory_space<vmem>>, vector<32x128xf32>
    %c0_1 = arith.constant 0 : index
    %c0_2 = arith.constant 0 : index
    %1 = vector.load %arg1[%c0_1, %c0_2] : memref<128x384xf32, #tpu.memory_space<vmem>>, vector<128x384xf32>
    %cst = arith.constant dense<0.000000e+00> : vector<32x384xf32>
    %2 = tpu.matmul %0, %1, %cst {dimension_numbers = #tpu.dot_dimension_numbers<[1], [0], [0], [1], [0, 0, 1, 1], [], []>} : vector<32x128xf32>, vector<128x384xf32>, vector<32x384xf32> -> vector<32x384xf32>
    %c0_3 = arith.constant 0 : index
    %c0_4 = arith.constant 0 : index
    %3 = vector.load %arg2[%c0_3, %c0_4] : memref<1x384xf32, #tpu.memory_space<vmem>>, vector<1x384xf32>
    %4 = vector.broadcast %3 : vector<1x384xf32> to vector<32x384xf32>
    %5 = arith.addf %2, %4 : vector<32x384xf32>
    %6 = vector.extract_strided_slice %5 {offsets = [0, 0], sizes = [32, 32], strides = [1, 1]} : vector<32x384xf32> to vector<32x32xf32>
    %7 = vector.shape_cast %6 : vector<32x32xf32> to vector<2x16x32xf32>
    %8 = vector.extract_strided_slice %5 {offsets = [0, 128], sizes = [32, 32], strides = [1, 1]} : vector<32x384xf32> to vector<32x32xf32>
    %9 = vector.shape_cast %8 : vector<32x32xf32> to vector<2x16x32xf32>
    %10 = vector.extract_strided_slice %5 {offsets = [0, 256], sizes = [32, 32], strides = [1, 1]} : vector<32x384xf32> to vector<32x32xf32>
    %11 = vector.shape_cast %10 : vector<32x32xf32> to vector<2x16x32xf32>
    "tpu.trace_start"() <{level = 10 : i32, message = "bqd,bkd->bqk"}> : () -> ()
    %cst_5 = arith.constant dense<0.000000e+00> : vector<2x16x16xf32>
    %12 = tpu.matmul %7, %9, %cst_5 {dimension_numbers = #tpu.dot_dimension_numbers<[2], [2], [1], [1], [0, 0, 0, 1, 1, 1], [0], [0]>} : vector<2x16x32xf32>, vector<2x16x32xf32>, vector<2x16x16xf32> -> vector<2x16x16xf32>
    "tpu.trace_stop"() : () -> ()
    %cst_6 = arith.constant dense<0xFF800000> : vector<2x16xf32>
    %13 = vector.multi_reduction <maximumf>, %12, %cst_6 [2] : vector<2x16x16xf32> to vector<2x16xf32>
    %14 = vector.shape_cast %13 : vector<2x16xf32> to vector<2x16x1xf32>
    %15 = vector.broadcast %14 : vector<2x16x1xf32> to vector<2x16x16xf32>
    %16 = arith.subf %12, %15 : vector<2x16x16xf32>
    %17 = math.exp %16 : vector<2x16x16xf32>
    %cst_7 = arith.constant dense<0.000000e+00> : vector<2x16xf32>
    %18 = vector.multi_reduction <add>, %17, %cst_7 [2] : vector<2x16x16xf32> to vector<2x16xf32>
    %19 = vector.shape_cast %18 : vector<2x16xf32> to vector<2x16x1xf32>
    %20 = tpu.reciprocal %19 {approx = true} : vector<2x16x1xf32> -> vector<2x16x1xf32>
    %21 = vector.broadcast %20 : vector<2x16x1xf32> to vector<2x16x16xf32>
    %22 = arith.mulf %17, %21 : vector<2x16x16xf32>
    "tpu.trace_start"() <{level = 10 : i32, message = "bqk,bkd->bqd"}> : () -> ()
    %cst_8 = arith.constant dense<0.000000e+00> : vector<2x16x32xf32>
    %23 = tpu.matmul %22, %11, %cst_8 {dimension_numbers = #tpu.dot_dimension_numbers<[2], [1], [1], [2], [0, 0, 0, 1, 1, 2], [0], [0]>} : vector<2x16x16xf32>, vector<2x16x32xf32>, vector<2x16x32xf32> -> vector<2x16x32xf32>
    "tpu.trace_stop"() : () -> ()
    %24 = vector.shape_cast %23 : vector<2x16x32xf32> to vector<32x32xf32>
    %c0_9 = arith.constant 0 : index
    %c0_10 = arith.constant 0 : index
    %25 = vector.load %arg8[%c0_9, %c0_10] : memref<32x128xf32, #tpu.memory_space<vmem>>, vector<32x32xf32>
    tpu.vector_store %arg8[%c0_9, %c0_10], %24 {strides = array<i32>} : memref<32x128xf32, #tpu.memory_space<vmem>>, vector<32x32xf32>,
    %26 = vector.extract_strided_slice %5 {offsets = [0, 32], sizes = [32, 32], strides = [1, 1]} : vector<32x384xf32> to vector<32x32xf32>
    %27 = vector.shape_cast %26 : vector<32x32xf32> to vector<2x16x32xf32>
    %28 = vector.extract_strided_slice %5 {offsets = [0, 160], sizes = [32, 32], strides = [1, 1]} : vector<32x384xf32> to vector<32x32xf32>
    %29 = vector.shape_cast %28 : vector<32x32xf32> to vector<2x16x32xf32>
    %30 = vector.extract_strided_slice %5 {offsets = [0, 288], sizes = [32, 32], strides = [1, 1]} : vector<32x384xf32> to vector<32x32xf32>
    %31 = vector.shape_cast %30 : vector<32x32xf32> to vector<2x16x32xf32>
    "tpu.trace_start"() <{level = 10 : i32, message = "bqd,bkd->bqk"}> : () -> ()
    %cst_11 = arith.constant dense<0.000000e+00> : vector<2x16x16xf32>
    %32 = tpu.matmul %27, %29, %cst_11 {dimension_numbers = #tpu.dot_dimension_numbers<[2], [2], [1], [1], [0, 0, 0, 1, 1, 1], [0], [0]>} : vector<2x16x32xf32>, vector<2x16x32xf32>, vector<2x16x16xf32> -> vector<2x16x16xf32>
    "tpu.trace_stop"() : () -> ()
    %cst_12 = arith.constant dense<0xFF800000> : vector<2x16xf32>
    %33 = vector.multi_reduction <maximumf>, %32, %cst_12 [2] : vector<2x16x16xf32> to vector<2x16xf32>
    %34 = vector.shape_cast %33 : vector<2x16xf32> to vector<2x16x1xf32>
    %35 = vector.broadcast %34 : vector<2x16x1xf32> to vector<2x16x16xf32>
    %36 = arith.subf %32, %35 : vector<2x16x16xf32>
    %37 = math.exp %36 : vector<2x16x16xf32>
    %cst_13 = arith.constant dense<0.000000e+00> : vector<2x16xf32>
    %38 = vector.multi_reduction <add>, %37, %cst_13 [2] : vector<2x16x16xf32> to vector<2x16xf32>
    %39 = vector.shape_cast %38 : vector<2x16xf32> to vector<2x16x1xf32>
    %40 = tpu.reciprocal %39 {approx = true} : vector<2x16x1xf32> -> vector<2x16x1xf32>
    %41 = vector.broadcast %40 : vector<2x16x1xf32> to vector<2x16x16xf32>
    %42 = arith.mulf %37, %41 : vector<2x16x16xf32>
    "tpu.trace_start"() <{level = 10 : i32, message = "bqk,bkd->bqd"}> : () -> ()
    %cst_14 = arith.constant dense<0.000000e+00> : vector<2x16x32xf32>
    %43 = tpu.matmul %42, %31, %cst_14 {dimension_numbers = #tpu.dot_dimension_numbers<[2], [1], [1], [2], [0, 0, 0, 1, 1, 2], [0], [0]>} : vector<2x16x16xf32>, vector<2x16x32xf32>, vector<2x16x32xf32> -> vector<2x16x32xf32>
    "tpu.trace_stop"() : () -> ()
    %44 = vector.shape_cast %43 : vector<2x16x32xf32> to vector<32x32xf32>
    %c0_15 = arith.constant 0 : index
    %c32 = arith.constant 32 : index
    %45 = vector.load %arg8[%c0_15, %c32] : memref<32x128xf32, #tpu.memory_space<vmem>>, vector<32x32xf32>
    tpu.vector_store %arg8[%c0_15, %c32], %44 {strides = array<i32>} : memref<32x128xf32, #tpu.memory_space<vmem>>, vector<32x32xf32>,
    %46 = vector.extract_strided_slice %5 {offsets = [0, 64], sizes = [32, 32], strides = [1, 1]} : vector<32x384xf32> to vector<32x32xf32>
    %47 = vector.shape_cast %46 : vector<32x32xf32> to vector<2x16x32xf32>
    %48 = vector.extract_strided_slice %5 {offsets = [0, 192], sizes = [32, 32], strides = [1, 1]} : vector<32x384xf32> to vector<32x32xf32>
    %49 = vector.shape_cast %48 : vector<32x32xf32> to vector<2x16x32xf32>
    %50 = vector.extract_strided_slice %5 {offsets = [0, 320], sizes = [32, 32], strides = [1, 1]} : vector<32x384xf32> to vector<32x32xf32>
    %51 = vector.shape_cast %50 : vector<32x32xf32> to vector<2x16x32xf32>
    "tpu.trace_start"() <{level = 10 : i32, message = "bqd,bkd->bqk"}> : () -> ()
    %cst_16 = arith.constant dense<0.000000e+00> : vector<2x16x16xf32>
    %52 = tpu.matmul %47, %49, %cst_16 {dimension_numbers = #tpu.dot_dimension_numbers<[2], [2], [1], [1], [0, 0, 0, 1, 1, 1], [0], [0]>} : vector<2x16x32xf32>, vector<2x16x32xf32>, vector<2x16x16xf32> -> vector<2x16x16xf32>
    "tpu.trace_stop"() : () -> ()
    %cst_17 = arith.constant dense<0xFF800000> : vector<2x16xf32>
    %53 = vector.multi_reduction <maximumf>, %52, %cst_17 [2] : vector<2x16x16xf32> to vector<2x16xf32>
    %54 = vector.shape_cast %53 : vector<2x16xf32> to vector<2x16x1xf32>
    %55 = vector.broadcast %54 : vector<2x16x1xf32> to vector<2x16x16xf32>
    %56 = arith.subf %52, %55 : vector<2x16x16xf32>
    %57 = math.exp %56 : vector<2x16x16xf32>
    %cst_18 = arith.constant dense<0.000000e+00> : vector<2x16xf32>
    %58 = vector.multi_reduction <add>, %57, %cst_18 [2] : vector<2x16x16xf32> to vector<2x16xf32>
    %59 = vector.shape_cast %58 : vector<2x16xf32> to vector<2x16x1xf32>
    %60 = tpu.reciprocal %59 {approx = true} : vector<2x16x1xf32> -> vector<2x16x1xf32>
    %61 = vector.broadcast %60 : vector<2x16x1xf32> to vector<2x16x16xf32>
    %62 = arith.mulf %57, %61 : vector<2x16x16xf32>
    "tpu.trace_start"() <{level = 10 : i32, message = "bqk,bkd->bqd"}> : () -> ()
    %cst_19 = arith.constant dense<0.000000e+00> : vector<2x16x32xf32>
    %63 = tpu.matmul %62, %51, %cst_19 {dimension_numbers = #tpu.dot_dimension_numbers<[2], [1], [1], [2], [0, 0, 0, 1, 1, 2], [0], [0]>} : vector<2x16x16xf32>, vector<2x16x32xf32>, vector<2x16x32xf32> -> vector<2x16x32xf32>
    "tpu.trace_stop"() : () -> ()
    %64 = vector.shape_cast %63 : vector<2x16x32xf32> to vector<32x32xf32>
    %c0_20 = arith.constant 0 : index
    %c64 = arith.constant 64 : index
    %65 = vector.load %arg8[%c0_20, %c64] : memref<32x128xf32, #tpu.memory_space<vmem>>, vector<32x32xf32>
    tpu.vector_store %arg8[%c0_20, %c64], %64 {strides = array<i32>} : memref<32x128xf32, #tpu.memory_space<vmem>>, vector<32x32xf32>,
    %66 = vector.extract_strided_slice %5 {offsets = [0, 96], sizes = [32, 32], strides = [1, 1]} : vector<32x384xf32> to vector<32x32xf32>
    %67 = vector.shape_cast %66 : vector<32x32xf32> to vector<2x16x32xf32>
    %68 = vector.extract_strided_slice %5 {offsets = [0, 224], sizes = [32, 32], strides = [1, 1]} : vector<32x384xf32> to vector<32x32xf32>
    %69 = vector.shape_cast %68 : vector<32x32xf32> to vector<2x16x32xf32>
    %70 = vector.extract_strided_slice %5 {offsets = [0, 352], sizes = [32, 32], strides = [1, 1]} : vector<32x384xf32> to vector<32x32xf32>
    %71 = vector.shape_cast %70 : vector<32x32xf32> to vector<2x16x32xf32>
    "tpu.trace_start"() <{level = 10 : i32, message = "bqd,bkd->bqk"}> : () -> ()
    %cst_21 = arith.constant dense<0.000000e+00> : vector<2x16x16xf32>
    %72 = tpu.matmul %67, %69, %cst_21 {dimension_numbers = #tpu.dot_dimension_numbers<[2], [2], [1], [1], [0, 0, 0, 1, 1, 1], [0], [0]>} : vector<2x16x32xf32>, vector<2x16x32xf32>, vector<2x16x16xf32> -> vector<2x16x16xf32>
    "tpu.trace_stop"() : () -> ()
    %cst_22 = arith.constant dense<0xFF800000> : vector<2x16xf32>
    %73 = vector.multi_reduction <maximumf>, %72, %cst_22 [2] : vector<2x16x16xf32> to vector<2x16xf32>
    %74 = vector.shape_cast %73 : vector<2x16xf32> to vector<2x16x1xf32>
    %75 = vector.broadcast %74 : vector<2x16x1xf32> to vector<2x16x16xf32>
    %76 = arith.subf %72, %75 : vector<2x16x16xf32>
    %77 = math.exp %76 : vector<2x16x16xf32>
    %cst_23 = arith.constant dense<0.000000e+00> : vector<2x16xf32>
    %78 = vector.multi_reduction <add>, %77, %cst_23 [2] : vector<2x16x16xf32> to vector<2x16xf32>
    %79 = vector.shape_cast %78 : vector<2x16xf32> to vector<2x16x1xf32>
    %80 = tpu.reciprocal %79 {approx = true} : vector<2x16x1xf32> -> vector<2x16x1xf32>
    %81 = vector.broadcast %80 : vector<2x16x1xf32> to vector<2x16x16xf32>
    %82 = arith.mulf %77, %81 : vector<2x16x16xf32>
    "tpu.trace_start"() <{level = 10 : i32, message = "bqk,bkd->bqd"}> : () -> ()
    %cst_24 = arith.constant dense<0.000000e+00> : vector<2x16x32xf32>
    %83 = tpu.matmul %82, %71, %cst_24 {dimension_numbers = #tpu.dot_dimension_numbers<[2], [1], [1], [2], [0, 0, 0, 1, 1, 2], [0], [0]>} : vector<2x16x16xf32>, vector<2x16x32xf32>, vector<2x16x32xf32> -> vector<2x16x32xf32>
    "tpu.trace_stop"() : () -> ()
    %84 = vector.shape_cast %83 : vector<2x16x32xf32> to vector<32x32xf32>
    %c0_25 = arith.constant 0 : index
    %c96 = arith.constant 96 : index
    %85 = vector.load %arg8[%c0_25, %c96] : memref<32x128xf32, #tpu.memory_space<vmem>>, vector<32x32xf32>
    tpu.vector_store %arg8[%c0_25, %c96], %84 {strides = array<i32>} : memref<32x128xf32, #tpu.memory_space<vmem>>, vector<32x32xf32>,
    %c0_26 = arith.constant 0 : index
    %c0_27 = arith.constant 0 : index
    %86 = vector.load %arg8[%c0_26, %c0_27] : memref<32x128xf32, #tpu.memory_space<vmem>>, vector<32x128xf32>
    %c0_28 = arith.constant 0 : index
    %c0_29 = arith.constant 0 : index
    %87 = vector.load %arg3[%c0_28, %c0_29] : memref<128x128xf32, #tpu.memory_space<vmem>>, vector<128x128xf32>
    %cst_30 = arith.constant dense<0.000000e+00> : vector<32x128xf32>
    %88 = tpu.matmul %86, %87, %cst_30 {dimension_numbers = #tpu.dot_dimension_numbers<[1], [0], [0], [1], [0, 0, 1, 1], [], []>} : vector<32x128xf32>, vector<128x128xf32>, vector<32x128xf32> -> vector<32x128xf32>
    %c0_31 = arith.constant 0 : index
    %c0_32 = arith.constant 0 : index
    %89 = vector.load %arg4[%c0_31, %c0_32] : memref<1x128xf32, #tpu.memory_space<vmem>>, vector<1x128xf32>
    %90 = vector.broadcast %89 : vector<1x128xf32> to vector<32x128xf32>
    %91 = arith.addf %88, %90 : vector<32x128xf32>
    %92 = arith.addf %91, %0 : vector<32x128xf32>
    %c0_33 = arith.constant 0 : index
    %c0_34 = arith.constant 0 : index
    %93 = vector.load %arg5[%c0_33, %c0_34] : memref<128x128xf32, #tpu.memory_space<vmem>>, vector<128x128xf32>
    %cst_35 = arith.constant dense<0.000000e+00> : vector<32x128xf32>
    %94 = tpu.matmul %92, %93, %cst_35 {dimension_numbers = #tpu.dot_dimension_numbers<[1], [0], [0], [1], [0, 0, 1, 1], [], []>} : vector<32x128xf32>, vector<128x128xf32>, vector<32x128xf32> -> vector<32x128xf32>
    %c0_36 = arith.constant 0 : index
    %c0_37 = arith.constant 0 : index
    %95 = vector.load %arg6[%c0_36, %c0_37] : memref<128x128xf32, #tpu.memory_space<vmem>>, vector<128x128xf32>
    %cst_38 = arith.constant dense<0.000000e+00> : vector<32x128xf32>
    %96 = tpu.matmul %94, %95, %cst_38 {dimension_numbers = #tpu.dot_dimension_numbers<[1], [0], [0], [1], [0, 0, 1, 1], [], []>} : vector<32x128xf32>, vector<128x128xf32>, vector<32x128xf32> -> vector<32x128xf32>
    %97 = arith.addf %96, %92 : vector<32x128xf32>
    %c0_39 = arith.constant 0 : index
    %c0_40 = arith.constant 0 : index
    %98 = vector.load %arg7[%c0_39, %c0_40] : memref<32x128xf32, #tpu.memory_space<vmem>>, vector<32x128xf32>
    tpu.vector_store %arg7[%c0_39, %c0_40], %97 {strides = array<i32>} : memref<32x128xf32, #tpu.memory_space<vmem>>, vector<32x128xf32>,
    return
  }
}

</mosaic_0001>

<llo_original>
// kernel: transformer_layer_pallas.1
$region0: #{transformer_layer_pallas.1}
  #allocation0 [shape = 'u32[]', space=smem, size = 0x4, offset = 0x4, fixed_abs, tag = 'smem constant byte address 0x4 - core index']
  #allocation1 [shape = 'u32[144,128]{1,0:T(1,128)}', space=vmem, size = 0x12000, scoped, tag = 'internal scratch']
  #allocation2 [shape = 'f32[32,128]{1,0:T(8,128)}', space=vmem, size = 0x4000, scoped, tag = 'scratch operand']
  %s0 = inlined_call_operand.vmem [shape: f32[32,128], index: 0, kind: input, shape index: {}, may-alias: {0,7}]
  %s1 = inlined_call_operand.vmem [shape: f32[128,384], index: 1, kind: input, shape index: {}]
  %s2 = inlined_call_operand.vmem [shape: f32[1,384], index: 2, kind: input, shape index: {}]
  %s3 = inlined_call_operand.vmem [shape: f32[128,128], index: 3, kind: input, shape index: {}]
  %s4 = inlined_call_operand.vmem [shape: f32[1,128], index: 4, kind: input, shape index: {}]
  %s5 = inlined_call_operand.vmem [shape: f32[128,128], index: 5, kind: input, shape index: {}]
  %s6 = inlined_call_operand.vmem [shape: f32[128,128], index: 6, kind: input, shape index: {}]
  %s7 = inlined_call_operand.vmem [shape: f32[32,128], index: 7, kind: output, shape index: {}, may-alias: {0,7}]
  %s8 = sld [smem:[#allocation0]]
  $region38: #{transformer_layer_pallas.1} parent=0
    _
  %s10 = ssub.s32 1, %s8
  %s11 = scalar_select 0, %s10, %s8
  // Predicated region
  $region2: #{transformer_layer_pallas.1} parent=0 // pred_check
    _
  $region3: #{transformer_layer_pallas.1} parent=0 // pred_check_branch
    %13 = sbr.rel (0) target = $region5
  $region4: #{transformer_layer_pallas.1} parent=0 // pred_region
    _
  $region5: #{transformer_layer_pallas.1} parent=0 // pred_fallthru
    _
  // Predicated region
  $region6: #{transformer_layer_pallas.1} parent=0 // pred_check
    _
  $region7: #{transformer_layer_pallas.1} parent=0 // pred_check_branch
    %15 = sbr.rel (0) target = $region9
  $region8: #{transformer_layer_pallas.1} parent=0 // pred_region
    _
  $region9: #{transformer_layer_pallas.1} parent=0 // pred_fallthru
    _
  // Predicated region
  $region10: #{transformer_layer_pallas.1} parent=0 // pred_check
    _
  $region11: #{transformer_layer_pallas.1} parent=0 // pred_check_branch
    %17 = sbr.rel (0) target = $region13
  $region12: #{transformer_layer_pallas.1} parent=0 // pred_region
    _
  $region13: #{transformer_layer_pallas.1} parent=0 // pred_fallthru
    _
  // Predicated region
  $region14: #{transformer_layer_pallas.1} parent=0 // pred_check
    _
  $region15: #{transformer_layer_pallas.1} parent=0 // pred_check_branch
    %19 = sbr.rel (0) target = $region17
  $region16: #{transformer_layer_pallas.1} parent=0 // pred_region
    _
  $region17: #{transformer_layer_pallas.1} parent=0 // pred_fallthru
    _
  // Predicated region
  $region18: #{transformer_layer_pallas.1} parent=0 // pred_check
    _
  $region19: #{transformer_layer_pallas.1} parent=0 // pred_check_branch
    %21 = sbr.rel (0) target = $region21
  $region20: #{transformer_layer_pallas.1} parent=0 // pred_region
    _
  $region21: #{transformer_layer_pallas.1} parent=0 // pred_fallthru
    _
  // Predicated region
  $region22: #{transformer_layer_pallas.1} parent=0 // pred_check
    _
  $region23: #{transformer_layer_pallas.1} parent=0 // pred_check_branch
    %23 = sbr.rel (0) target = $region25
  $region24: #{transformer_layer_pallas.1} parent=0 // pred_region
    _
  $region25: #{transformer_layer_pallas.1} parent=0 // pred_fallthru
    _
  // Predicated region
  $region26: #{transformer_layer_pallas.1} parent=0 // pred_check
    _
  $region27: #{transformer_layer_pallas.1} parent=0 // pred_check_branch
    %25 = sbr.rel (0) target = $region29
  $region28: #{transformer_layer_pallas.1} parent=0 // pred_region
    _
  $region29: #{transformer_layer_pallas.1} parent=0 // pred_fallthru
    _
  %v26 = vld [vmem:[%s0] sm:$0xff]
  %v27 = vld [vmem:[%s0 + $0x8] sm:$0xff]
  %v28 = vld [vmem:[%s0 + $0x10] sm:$0xff]
  %v29 = vld [vmem:[%s0 + $0x18] sm:$0xff]
  %v30 = vld [vmem:[%s1] sm:$0xff]
  %v31 = vld [vmem:[%s1 + $0x8] sm:$0xff]
  %v32 = vld [vmem:[%s1 + $0x10] sm:$0xff]
  %v33 = vld [vmem:[%s1 + $0x18] sm:$0xff]
  %v34 = vld [vmem:[%s1 + $0x20] sm:$0xff]
  %v35 = vld [vmem:[%s1 + $0x28] sm:$0xff]
  %v36 = vld [vmem:[%s1 + $0x30] sm:$0xff]
  %v37 = vld [vmem:[%s1 + $0x38] sm:$0xff]
  %v38 = vld [vmem:[%s1 + $0x40] sm:$0xff]
  %v39 = vld [vmem:[%s1 + $0x48] sm:$0xff]
  %v40 = vld [vmem:[%s1 + $0x50] sm:$0xff]
  %v41 = vld [vmem:[%s1 + $0x58] sm:$0xff]
  %v42 = vld [vmem:[%s1 + $0x60] sm:$0xff]
  %v43 = vld [vmem:[%s1 + $0x68] sm:$0xff]
  %v44 = vld [vmem:[%s1 + $0x70] sm:$0xff]
  %v45 = vld [vmem:[%s1 + $0x78] sm:$0xff]
  %v46 = vld [vmem:[%s1 + $0x80] sm:$0xff]
  %v47 = vld [vmem:[%s1 + $0x88] sm:$0xff]
  %v48 = vld [vmem:[%s1 + $0x90] sm:$0xff]
  %v49 = vld [vmem:[%s1 + $0x98] sm:$0xff]
  %v50 = vld [vmem:[%s1 + $0xa0] sm:$0xff]
  %v51 = vld [vmem:[%s1 + $0xa8] sm:$0xff]
  %v52 = vld [vmem:[%s1 + $0xb0] sm:$0xff]
  %v53 = vld [vmem:[%s1 + $0xb8] sm:$0xff]
  %v54 = vld [vmem:[%s1 + $0xc0] sm:$0xff]
  %v55 = vld [vmem:[%s1 + $0xc8] sm:$0xff]
  %v56 = vld [vmem:[%s1 + $0xd0] sm:$0xff]
  %v57 = vld [vmem:[%s1 + $0xd8] sm:$0xff]
  %v58 = vld [vmem:[%s1 + $0xe0] sm:$0xff]
  %v59 = vld [vmem:[%s1 + $0xe8] sm:$0xff]
  %v60 = vld [vmem:[%s1 + $0xf0] sm:$0xff]
  %v61 = vld [vmem:[%s1 + $0xf8] sm:$0xff]
  %v62 = vld [vmem:[%s1 + $0x100] sm:$0xff]
  %v63 = vld [vmem:[%s1 + $0x108] sm:$0xff]
  %v64 = vld [vmem:[%s1 + $0x110] sm:$0xff]
  %v65 = vld [vmem:[%s1 + $0x118] sm:$0xff]
  %v66 = vld [vmem:[%s1 + $0x120] sm:$0xff]
  %v67 = vld [vmem:[%s1 + $0x128] sm:$0xff]
  %v68 = vld [vmem:[%s1 + $0x130] sm:$0xff]
  %v69 = vld [vmem:[%s1 + $0x138] sm:$0xff]
  %v70 = vld [vmem:[%s1 + $0x140] sm:$0xff]
  %v71 = vld [vmem:[%s1 + $0x148] sm:$0xff]
  %v72 = vld [vmem:[%s1 + $0x150] sm:$0xff]
  %v73 = vld [vmem:[%s1 + $0x158] sm:$0xff]
  %v74 = vld [vmem:[%s1 + $0x160] sm:$0xff]
  %v75 = vld [vmem:[%s1 + $0x168] sm:$0xff]
  %v76 = vld [vmem:[%s1 + $0x170] sm:$0xff]
  %v77 = vld [vmem:[%s1 + $0x178] sm:$0xff]
  %v78 = vld [vmem:[%s2] sm:$0x7]
  %v80 = vlaneseq
  %v81 = vshrl.u32 %v80, 7
  %v82 = vsub.s32 0, %v81
  %v83 = vrot.slane %v78, %v82
  %v84 = vlaneseq
  %v85 = vshrl.u32 %v84, 7
  %v86 = vsub.s32 1, %v85
  %v87 = vrot.slane %v78, %v86
  %v88 = vlaneseq
  %v89 = vshrl.u32 %v88, 7
  %v90 = vsub.s32 2, %v89
  %v91 = vrot.slane %v78, %v90
  %95 = vmatprep.subr.mxu0 %v31
  %96 = vmatpush1.msra.mxu0 %v30
  %97 = vmatprep.subr.mxu0 %v34
  %98 = vmatpush1.msra.mxu0 %v33
  %99 = vmatprep.subr.mxu0 %v37
  %100 = vmatpush1.msra.mxu0 %v36
  %101 = vmatprep.subr.mxu0 %v40
  %102 = vmatpush1.msra.mxu0 %v39
  %103 = vmatprep.subr.mxu0 %v43
  %104 = vmatpush1.msra.mxu0 %v42
  %105 = vmatprep.subr.mxu0 %v46
  %106 = vmatpush1.msra.mxu0 %v45
  %107 = vmatprep.subr.mxu0 %v49
  %108 = vmatpush1.msra.mxu0 %v48
  %109 = vmatprep.subr.mxu0 %v52
  %110 = vmatpush1.msra.mxu0 %v51
  %111 = vmatprep.subr.mxu0 %v55
  %112 = vmatpush1.msra.mxu0 %v54
  %113 = vmatprep.subr.mxu0 %v58
  %114 = vmatpush1.msra.mxu0 %v57
  %115 = vmatprep.subr.mxu0 %v61
  %116 = vmatpush1.msra.mxu0 %v60
  %117 = vmatprep.subr.mxu0 %v64
  %118 = vmatpush1.msra.mxu0 %v63
  %119 = vmatprep.subr.mxu0 %v67
  %120 = vmatpush1.msra.mxu0 %v66
  %121 = vmatprep.subr.mxu0 %v70
  %122 = vmatpush1.msra.mxu0 %v69
  %123 = vmatprep.subr.mxu0 %v73
  %124 = vmatpush1.msra.mxu0 %v72
  %125 = vmatprep.subr.mxu0 %v76
  %126 = vmatpush1.msra.mxu0 %v75
  %127 = vmatprep.subr.mxu0 0.0
  %128 = vmatpush1.msra.mxu0 0.0
  %129 = vmatprep.subr.mxu0 0.0
  %130 = vmatpush1.msra.mxu0 0.0
  %131 = vmatprep.subr.mxu0 0.0
  %132 = vmatpush1.msra.mxu0 0.0
  %133 = vmatprep.subr.mxu0 0.0
  %134 = vmatpush1.msra.mxu0 0.0
  %135 = vmatprep.subr.mxu0 0.0
  %136 = vmatpush1.msra.mxu0 0.0
  %137 = vmatprep.subr.mxu0 0.0
  %138 = vmatpush1.msra.mxu0 0.0
  %139 = vmatprep.subr.mxu0 0.0
  %140 = vmatpush1.msra.mxu0 0.0
  %141 = vmatprep.subr.mxu0 0.0
  %142 = vmatpush1.msra.mxu0 0.0
  %143 = vmatprep.subr.mxu0 0.0
  %144 = vmatpush1.msra.mxu0 0.0
  %145 = vmatprep.subr.mxu0 0.0
  %146 = vmatpush1.msra.mxu0 0.0
  %147 = vmatprep.subr.mxu0 0.0
  %148 = vmatpush1.msra.mxu0 0.0
  %149 = vmatprep.subr.mxu0 0.0
  %150 = vmatpush1.msra.mxu0 0.0
  %151 = vmatprep.subr.mxu0 0.0
  %152 = vmatpush1.msra.mxu0 0.0
  %153 = vmatprep.subr.mxu0 0.0
  %154 = vmatpush1.msra.mxu0 0.0
  %155 = vmatprep.subr.mxu0 0.0
  %156 = vmatpush1.msra.mxu0 0.0
  %157 = vmatprep.subr.mxu0 0.0
  %158 = vmatpush1.msra.mxu0 0.0
  %159 = vmatprep.mubr.f32.mxu0 0.0
  %160 = vmatmul.mubr.f32.gmra.mrb[0].mxu0 %v26
  %v161 = vpop.f32.mrb[0].mxu0
  %v162 = vadd.f32 %v83, %v161
  %v163 = vpop.f32.mrb[0].mxu0
  %v164 = vadd.f32 %v87, %v163
  %165 = vmatprep.mubr.f32.mxu0 0.0
  %166 = vmatmul.mubr.f32.gmra.mrb[0].mxu0 %v27
  %v167 = vpop.f32.mrb[0].mxu0
  %v168 = vadd.f32 %v83, %v167
  %v169 = vpop.f32.mrb[0].mxu0
  %v170 = vadd.f32 %v87, %v169
  %171 = vmatprep.mubr.f32.mxu0 0.0
  %172 = vmatmul.mubr.f32.gmra.mrb[0].mxu0 %v28
  %v173 = vpop.f32.mrb[0].mxu0
  %v174 = vadd.f32 %v83, %v173
  %v175 = vpop.f32.mrb[0].mxu0
  %v176 = vadd.f32 %v87, %v175
  %177 = vmatprep.mubr.f32.mxu0 0.0
  %178 = vmatmul.mubr.f32.gmra.mrb[0].mxu0 %v29
  %v179 = vpop.f32.mrb[0].mxu0
  %v180 = vadd.f32 %v83, %v179
  %v181 = vpop.f32.mrb[0].mxu0
  %v182 = vadd.f32 %v87, %v181
  %183 = vdwg.mxu0
  %184 = vmatprep.subr.mxu0 0.0
  %185 = vmatpush1.msra.mxu0 %v32
  %186 = vmatprep.subr.mxu0 0.0
  %187 = vmatpush1.msra.mxu0 %v35
  %188 = vmatprep.subr.mxu0 0.0
  %189 = vmatpush1.msra.mxu0 %v38
  %190 = vmatprep.subr.mxu0 0.0
  %191 = vmatpush1.msra.mxu0 %v41
  %192 = vmatprep.subr.mxu0 0.0
  %193 = vmatpush1.msra.mxu0 %v44
  %194 = vmatprep.subr.mxu0 0.0
  %195 = vmatpush1.msra.mxu0 %v47
  %196 = vmatprep.subr.mxu0 0.0
  %197 = vmatpush1.msra.mxu0 %v50
  %198 = vmatprep.subr.mxu0 0.0
  %199 = vmatpush1.msra.mxu0 %v53
  %200 = vmatprep.subr.mxu0 0.0
  %201 = vmatpush1.msra.mxu0 %v56
  %202 = vmatprep.subr.mxu0 0.0
  %203 = vmatpush1.msra.mxu0 %v59
  %204 = vmatprep.subr.mxu0 0.0
  %205 = vmatpush1.msra.mxu0 %v62
  %206 = vmatprep.subr.mxu0 0.0
  %207 = vmatpush1.msra.mxu0 %v65
  %208 = vmatprep.subr.mxu0 0.0
  %209 = vmatpush1.msra.mxu0 %v68
  %210 = vmatprep.subr.mxu0 0.0
  %211 = vmatpush1.msra.mxu0 %v71
  %212 = vmatprep.subr.mxu0 0.0
  %213 = vmatpush1.msra.mxu0 %v74
  %214 = vmatprep.subr.mxu0 0.0
  %215 = vmatpush1.msra.mxu0 %v77
  %216 = vmatprep.subr.mxu0 0.0
  %217 = vmatpush1.msra.mxu0 0.0
  %218 = vmatprep.subr.mxu0 0.0
  %219 = vmatpush1.msra.mxu0 0.0
  %220 = vmatprep.subr.mxu0 0.0
  %221 = vmatpush1.msra.mxu0 0.0
  %222 = vmatprep.subr.mxu0 0.0
  %223 = vmatpush1.msra.mxu0 0.0
  %224 = vmatprep.subr.mxu0 0.0
  %225 = vmatpush1.msra.mxu0 0.0
  %226 = vmatprep.subr.mxu0 0.0
  %227 = vmatpush1.msra.mxu0 0.0
  %228 = vmatprep.subr.mxu0 0.0
  %229 = vmatpush1.msra.mxu0 0.0
  %230 = vmatprep.subr.mxu0 0.0
  %231 = vmatpush1.msra.mxu0 0.0
  %232 = vmatprep.subr.mxu0 0.0
  %233 = vmatpush1.msra.mxu0 0.0
  %234 = vmatprep.subr.mxu0 0.0
  %235 = vmatpush1.msra.mxu0 0.0
  %236 = vmatprep.subr.mxu0 0.0
  %237 = vmatpush1.msra.mxu0 0.0
  %238 = vmatprep.subr.mxu0 0.0
  %239 = vmatpush1.msra.mxu0 0.0
  %240 = vmatprep.subr.mxu0 0.0
  %241 = vmatpush1.msra.mxu0 0.0
  %242 = vmatprep.subr.mxu0 0.0
  %243 = vmatpush1.msra.mxu0 0.0
  %244 = vmatprep.subr.mxu0 0.0
  %245 = vmatpush1.msra.mxu0 0.0
  %246 = vmatprep.subr.mxu0 0.0
  %247 = vmatpush1.msra.mxu0 0.0
  %248 = vmatprep.mubr.f32.mxu0 0.0
  %249 = vmatmul.mubr.f32.gmra.mrb[0].mxu0 %v26
  %v250 = vpop.f32.mrb[0].mxu0
  %v251 = vadd.f32 %v91, %v250
  %v252 = vpop.f32.mrb[0].mxu0
  %253 = vmatprep.mubr.f32.mxu0 0.0
  %254 = vmatmul.mubr.f32.gmra.mrb[0].mxu0 %v27
  %v255 = vpop.f32.mrb[0].mxu0
  %v256 = vadd.f32 %v91, %v255
  %v257 = vpop.f32.mrb[0].mxu0
  %258 = vmatprep.mubr.f32.mxu0 0.0
  %259 = vmatmul.mubr.f32.gmra.mrb[0].mxu0 %v28
  %v260 = vpop.f32.mrb[0].mxu0
  %v261 = vadd.f32 %v91, %v260
  %v262 = vpop.f32.mrb[0].mxu0
  %263 = vmatprep.mubr.f32.mxu0 0.0
  %264 = vmatmul.mubr.f32.gmra.mrb[0].mxu0 %v29
  %v265 = vpop.f32.mrb[0].mxu0
  %v266 = vadd.f32 %v91, %v265
  %v267 = vpop.f32.mrb[0].mxu0
  %268 = vdwg.mxu0
  %vm269 = vcmask 261120
  %v271 = vsel %vm269, %v162, 0
  %v274 = vsel %vm269, %v168, 0
  %v277 = vsel %vm269, %v164, 0
  %v280 = vsel %vm269, %v170, 0
  %282 = vmatprep.subr.mxu0 0.0
  %283 = vmatpush1.xpose.msra.mxu0 %v277
  %284 = vmatprep.subr.mxu0 0.0
  %285 = vmatpush1.xpose.msra.mxu0 %v280
  %286 = vmatprep.subr.mxu0 0.0
  %287 = vmatpush1.xpose.msra.mxu0 0.0
  %288 = vmatprep.subr.mxu0 0.0
  %289 = vmatpush1.xpose.msra.mxu0 0.0
  %290 = vmatprep.subr.mxu0 0.0
  %291 = vmatpush1.xpose.msra.mxu0 0.0
  %292 = vmatprep.subr.mxu0 0.0
  %293 = vmatpush1.xpose.msra.mxu0 0.0
  %294 = vmatprep.subr.mxu0 0.0
  %295 = vmatpush1.xpose.msra.mxu0 0.0
  %296 = vmatprep.subr.mxu0 0.0
  %297 = vmatpush1.xpose.msra.mxu0 0.0
  %298 = vmatprep.subr.mxu0 0.0
  %299 = vmatpush1.xpose.msra.mxu0 0.0
  %300 = vmatprep.subr.mxu0 0.0
  %301 = vmatpush1.xpose.msra.mxu0 0.0
  %302 = vmatprep.subr.mxu0 0.0
  %303 = vmatpush1.xpose.msra.mxu0 0.0
  %304 = vmatprep.subr.mxu0 0.0
  %305 = vmatpush1.xpose.msra.mxu0 0.0
  %306 = vmatprep.subr.mxu0 0.0
  %307 = vmatpush1.xpose.msra.mxu0 0.0
  %308 = vmatprep.subr.mxu0 0.0
  %309 = vmatpush1.xpose.msra.mxu0 0.0
  %310 = vmatprep.subr.mxu0 0.0
  %311 = vmatpush1.xpose.msra.mxu0 0.0
  %312 = vmatprep.subr.mxu0 0.0
  %313 = vmatpush1.xpose.msra.mxu0 0.0
  %314 = vmatprep.subr.mxu0 0.0
  %315 = vmatpush1.xpose.msra.mxu0 0.0
  %316 = vmatprep.subr.mxu0 0.0
  %317 = vmatpush1.xpose.msra.mxu0 0.0
  %318 = vmatprep.subr.mxu0 0.0
  %319 = vmatpush1.xpose.msra.mxu0 0.0
  %320 = vmatprep.subr.mxu0 0.0
  %321 = vmatpush1.xpose.msra.mxu0 0.0
  %322 = vmatprep.subr.mxu0 0.0
  %323 = vmatpush1.xpose.msra.mxu0 0.0
  %324 = vmatprep.subr.mxu0 0.0
  %325 = vmatpush1.xpose.msra.mxu0 0.0
  %326 = vmatprep.subr.mxu0 0.0
  %327 = vmatpush1.xpose.msra.mxu0 0.0
  %328 = vmatprep.subr.mxu0 0.0
  %329 = vmatpush1.xpose.msra.mxu0 0.0
  %330 = vmatprep.subr.mxu0 0.0
  %331 = vmatpush1.xpose.msra.mxu0 0.0
  %332 = vmatprep.subr.mxu0 0.0
  %333 = vmatpush1.xpose.msra.mxu0 0.0
  %334 = vmatprep.subr.mxu0 0.0
  %335 = vmatpush1.xpose.msra.mxu0 0.0
  %336 = vmatprep.subr.mxu0 0.0
  %337 = vmatpush1.xpose.msra.mxu0 0.0
  %338 = vmatprep.subr.mxu0 0.0
  %339 = vmatpush1.xpose.msra.mxu0 0.0
  %340 = vmatprep.subr.mxu0 0.0
  %341 = vmatpush1.xpose.msra.mxu0 0.0
  %342 = vmatprep.subr.mxu0 0.0
  %343 = vmatpush1.xpose.msra.mxu0 0.0
  %344 = vmatprep.subr.mxu0 0.0
  %345 = vmatpush1.xpose.msra.mxu0 0.0
  %346 = vmatprep.mubr.f32.mxu0 0.0
  %347 = vmatmul.mubr.f32.gmra.mrb[0].mxu0 %v271
  %v348 = vpop.f32.mrb[0].mxu0
  %v349 = vadd.f32 0.0, %v348
  %v350 = vpop.f32.mrb[0].mxu0
  %351 = vmatprep.mubr.f32.mxu0 0.0
  %352 = vmatmul.mubr.f32.gmra.mrb[0].mxu0 %v274
  %v353 = vpop.f32.mrb[0].mxu0
  %v354 = vadd.f32 0.0, %v353
  %v355 = vpop.f32.mrb[0].mxu0
  %356 = vdwg.mxu0
  %v358 = vsel %vm269, %v174, 0
  %v361 = vsel %vm269, %v180, 0
  %v364 = vsel %vm269, %v176, 0
  %v367 = vsel %vm269, %v182, 0
  %369 = vmatprep.subr.mxu0 0.0
  %370 = vmatpush1.xpose.msra.mxu0 %v364
  %371 = vmatprep.subr.mxu0 0.0
  %372 = vmatpush1.xpose.msra.mxu0 %v367
  %373 = vmatprep.subr.mxu0 0.0
  %374 = vmatpush1.xpose.msra.mxu0 0.0
  %375 = vmatprep.subr.mxu0 0.0
  %376 = vmatpush1.xpose.msra.mxu0 0.0
  %377 = vmatprep.subr.mxu0 0.0
  %378 = vmatpush1.xpose.msra.mxu0 0.0
  %379 = vmatprep.subr.mxu0 0.0
  %380 = vmatpush1.xpose.msra.mxu0 0.0
  %381 = vmatprep.subr.mxu0 0.0
  %382 = vmatpush1.xpose.msra.mxu0 0.0
  %383 = vmatprep.subr.mxu0 0.0
  %384 = vmatpush1.xpose.msra.mxu0 0.0
  %385 = vmatprep.subr.mxu0 0.0
  %386 = vmatpush1.xpose.msra.mxu0 0.0
  %387 = vmatprep.subr.mxu0 0.0
  %388 = vmatpush1.xpose.msra.mxu0 0.0
  %389 = vmatprep.subr.mxu0 0.0
  %390 = vmatpush1.xpose.msra.mxu0 0.0
  %391 = vmatprep.subr.mxu0 0.0
  %392 = vmatpush1.xpose.msra.mxu0 0.0
  %393 = vmatprep.subr.mxu0 0.0
  %394 = vmatpush1.xpose.msra.mxu0 0.0
  %395 = vmatprep.subr.mxu0 0.0
  %396 = vmatpush1.xpose.msra.mxu0 0.0
  %397 = vmatprep.subr.mxu0 0.0
  %398 = vmatpush1.xpose.msra.mxu0 0.0
  %399 = vmatprep.subr.mxu0 0.0
  %400 = vmatpush1.xpose.msra.mxu0 0.0
  %401 = vmatprep.subr.mxu0 0.0
  %402 = vmatpush1.xpose.msra.mxu0 0.0
  %403 = vmatprep.subr.mxu0 0.0
  %404 = vmatpush1.xpose.msra.mxu0 0.0
  %405 = vmatprep.subr.mxu0 0.0
  %406 = vmatpush1.xpose.msra.mxu0 0.0
  %407 = vmatprep.subr.mxu0 0.0
  %408 = vmatpush1.xpose.msra.mxu0 0.0
  %409 = vmatprep.subr.mxu0 0.0
  %410 = vmatpush1.xpose.msra.mxu0 0.0
  %411 = vmatprep.subr.mxu0 0.0
  %412 = vmatpush1.xpose.msra.mxu0 0.0
  %413 = vmatprep.subr.mxu0 0.0
  %414 = vmatpush1.xpose.msra.mxu0 0.0
  %415 = vmatprep.subr.mxu0 0.0
  %416 = vmatpush1.xpose.msra.mxu0 0.0
  %417 = vmatprep.subr.mxu0 0.0
  %418 = vmatpush1.xpose.msra.mxu0 0.0
  %419 = vmatprep.subr.mxu0 0.0
  %420 = vmatpush1.xpose.msra.mxu0 0.0
  %421 = vmatprep.subr.mxu0 0.0
  %422 = vmatpush1.xpose.msra.mxu0 0.0
  %423 = vmatprep.subr.mxu0 0.0
  %424 = vmatpush1.xpose.msra.mxu0 0.0
  %425 = vmatprep.subr.mxu0 0.0
  %426 = vmatpush1.xpose.msra.mxu0 0.0
  %427 = vmatprep.subr.mxu0 0.0
  %428 = vmatpush1.xpose.msra.mxu0 0.0
  %429 = vmatprep.subr.mxu0 0.0
  %430 = vmatpush1.xpose.msra.mxu0 0.0
  %431 = vmatprep.subr.mxu0 0.0
  %432 = vmatpush1.xpose.msra.mxu0 0.0
  %433 = vmatprep.mubr.f32.mxu0 0.0
  %434 = vmatmul.mubr.f32.gmra.mrb[0].mxu0 %v358
  %v435 = vpop.f32.mrb[0].mxu0
  %v436 = vadd.f32 0.0, %v435
  %v437 = vpop.f32.mrb[0].mxu0
  %438 = vmatprep.mubr.f32.mxu0 0.0
  %439 = vmatmul.mubr.f32.gmra.mrb[0].mxu0 %v361
  %v440 = vpop.f32.mrb[0].mxu0
  %v441 = vadd.f32 0.0, %v440
  %v442 = vpop.f32.mrb[0].mxu0
  %443 = vdwg.mxu0
  %vm444 = vcmask 130048
  %v445 = vsel %vm444, %v349, -inf
  %446 = vmax.xlane.f32.xlu0 %v445
  %v447 = vpop.xlane.xlu0 %446
  %v448 = vsel %vm444, %v354, -inf
  %449 = vmax.xlane.f32.xlu0 %v448
  %v450 = vpop.xlane.xlu0 %449
  %v451 = vsel %vm444, %v436, -inf
  %452 = vmax.xlane.f32.xlu0 %v451
  %v453 = vpop.xlane.xlu0 %452
  %v454 = vsel %vm444, %v441, -inf
  %455 = vmax.xlane.f32.xlu0 %v454
  %v456 = vpop.xlane.xlu0 %455
  %v457 = vsub.f32 %v349, %v447
  %v458 = vsub.f32 %v354, %v450
  %v459 = vsub.f32 %v436, %v453
  %v460 = vsub.f32 %v441, %v456
  %v461 = vmul.f32 %v457, 1.442695
  %v462 = vpow.pop %v461
  %v463 = vmul.f32 %v458, 1.442695
  %v464 = vpow.pop %v463
  %v465 = vmul.f32 %v459, 1.442695
  %v466 = vpow.pop %v465
  %v467 = vmul.f32 %v460, 1.442695
  %v468 = vpow.pop %v467
  %v469 = vsel %vm444, %v462, 0.0
  %470 = vadd.xlane.f32.xlu0 %v469
  %v471 = vpop.xlane.xlu0 %470
  %v472 = vsel %vm444, %v464, 0.0
  %473 = vadd.xlane.f32.xlu0 %v472
  %v474 = vpop.xlane.xlu0 %473
  %v475 = vsel %vm444, %v466, 0.0
  %476 = vadd.xlane.f32.xlu0 %v475
  %v477 = vpop.xlane.xlu0 %476
  %v478 = vsel %vm444, %v468, 0.0
  %479 = vadd.xlane.f32.xlu0 %v478
  %v480 = vpop.xlane.xlu0 %479
  %v481 = vrcp.pop %v471
  %v482 = vrcp.pop %v474
  %v483 = vrcp.pop %v477
  %v484 = vrcp.pop %v480
  %v485 = vmul.f32 %v462, %v481
  %v486 = vmul.f32 %v464, %v482
  %v487 = vmul.f32 %v466, %v483
  %v488 = vmul.f32 %v468, %v484
  %v490 = vsel %vm444, %v485, 0
  %v493 = vsel %vm444, %v486, 0
  %495 = vmatprep.subr.mxu0 0.0
  %496 = vmatpush1.msra.mxu0 %v251
  %497 = vmatprep.subr.mxu0 0.0
  %498 = vmatpush1.msra.mxu0 %v256
  %499 = vmatprep.subr.mxu0 0.0
  %500 = vmatpush1.msra.mxu0 0.0
  %501 = vmatprep.subr.mxu0 0.0
  %502 = vmatpush1.msra.mxu0 0.0
  %503 = vmatprep.subr.mxu0 0.0
  %504 = vmatpush1.msra.mxu0 0.0
  %505 = vmatprep.subr.mxu0 0.0
  %506 = vmatpush1.msra.mxu0 0.0
  %507 = vmatprep.subr.mxu0 0.0
  %508 = vmatpush1.msra.mxu0 0.0
  %509 = vmatprep.subr.mxu0 0.0
  %510 = vmatpush1.msra.mxu0 0.0
  %511 = vmatprep.subr.mxu0 0.0
  %512 = vmatpush1.msra.mxu0 0.0
  %513 = vmatprep.subr.mxu0 0.0
  %514 = vmatpush1.msra.mxu0 0.0
  %515 = vmatprep.subr.mxu0 0.0
  %516 = vmatpush1.msra.mxu0 0.0
  %517 = vmatprep.subr.mxu0 0.0
  %518 = vmatpush1.msra.mxu0 0.0
  %519 = vmatprep.subr.mxu0 0.0
  %520 = vmatpush1.msra.mxu0 0.0
  %521 = vmatprep.subr.mxu0 0.0
  %522 = vmatpush1.msra.mxu0 0.0
  %523 = vmatprep.subr.mxu0 0.0
  %524 = vmatpush1.msra.mxu0 0.0
  %525 = vmatprep.subr.mxu0 0.0
  %526 = vmatpush1.msra.mxu0 0.0
  %527 = vmatprep.subr.mxu0 0.0
  %528 = vmatpush1.msra.mxu0 0.0
  %529 = vmatprep.subr.mxu0 0.0
  %530 = vmatpush1.msra.mxu0 0.0
  %531 = vmatprep.subr.mxu0 0.0
  %532 = vmatpush1.msra.mxu0 0.0
  %533 = vmatprep.subr.mxu0 0.0
  %534 = vmatpush1.msra.mxu0 0.0
  %535 = vmatprep.subr.mxu0 0.0
  %536 = vmatpush1.msra.mxu0 0.0
  %537 = vmatprep.subr.mxu0 0.0
  %538 = vmatpush1.msra.mxu0 0.0
  %539 = vmatprep.subr.mxu0 0.0
  %540 = vmatpush1.msra.mxu0 0.0
  %541 = vmatprep.subr.mxu0 0.0
  %542 = vmatpush1.msra.mxu0 0.0
  %543 = vmatprep.subr.mxu0 0.0
  %544 = vmatpush1.msra.mxu0 0.0
  %545 = vmatprep.subr.mxu0 0.0
  %546 = vmatpush1.msra.mxu0 0.0
  %547 = vmatprep.subr.mxu0 0.0
  %548 = vmatpush1.msra.mxu0 0.0
  %549 = vmatprep.subr.mxu0 0.0
  %550 = vmatpush1.msra.mxu0 0.0
  %551 = vmatprep.subr.mxu0 0.0
  %552 = vmatpush1.msra.mxu0 0.0
  %553 = vmatprep.subr.mxu0 0.0
  %554 = vmatpush1.msra.mxu0 0.0
  %555 = vmatprep.subr.mxu0 0.0
  %556 = vmatpush1.msra.mxu0 0.0
  %557 = vmatprep.subr.mxu0 0.0
  %558 = vmatpush1.msra.mxu0 0.0
  %559 = vmatprep.mubr.f32.mxu0 0.0
  %560 = vmatmul.mubr.f32.gmra.mrb[0].mxu0 %v490
  %v561 = vpop.f32.mrb[0].mxu0
  %v562 = vadd.f32 0.0, %v561
  %v563 = vpop.f32.mrb[0].mxu0
  %564 = vmatprep.mubr.f32.mxu0 0.0
  %565 = vmatmul.mubr.f32.gmra.mrb[0].mxu0 %v493
  %v566 = vpop.f32.mrb[0].mxu0
  %v567 = vadd.f32 0.0, %v566
  %v568 = vpop.f32.mrb[0].mxu0
  %569 = vdwg.mxu0
  %v571 = vsel %vm444, %v487, 0
  %v574 = vsel %vm444, %v488, 0
  %576 = vmatprep.subr.mxu0 0.0
  %577 = vmatpush1.msra.mxu0 %v261
  %578 = vmatprep.subr.mxu0 0.0
  %579 = vmatpush1.msra.mxu0 %v266
  %580 = vmatprep.subr.mxu0 0.0
  %581 = vmatpush1.msra.mxu0 0.0
  %582 = vmatprep.subr.mxu0 0.0
  %583 = vmatpush1.msra.mxu0 0.0
  %584 = vmatprep.subr.mxu0 0.0
  %585 = vmatpush1.msra.mxu0 0.0
  %586 = vmatprep.subr.mxu0 0.0
  %587 = vmatpush1.msra.mxu0 0.0
  %588 = vmatprep.subr.mxu0 0.0
  %589 = vmatpush1.msra.mxu0 0.0
  %590 = vmatprep.subr.mxu0 0.0
  %591 = vmatpush1.msra.mxu0 0.0
  %592 = vmatprep.subr.mxu0 0.0
  %593 = vmatpush1.msra.mxu0 0.0
  %594 = vmatprep.subr.mxu0 0.0
  %595 = vmatpush1.msra.mxu0 0.0
  %596 = vmatprep.subr.mxu0 0.0
  %597 = vmatpush1.msra.mxu0 0.0
  %598 = vmatprep.subr.mxu0 0.0
  %599 = vmatpush1.msra.mxu0 0.0
  %600 = vmatprep.subr.mxu0 0.0
  %601 = vmatpush1.msra.mxu0 0.0
  %602 = vmatprep.subr.mxu0 0.0
  %603 = vmatpush1.msra.mxu0 0.0
  %604 = vmatprep.subr.mxu0 0.0
  %605 = vmatpush1.msra.mxu0 0.0
  %606 = vmatprep.subr.mxu0 0.0
  %607 = vmatpush1.msra.mxu0 0.0
  %608 = vmatprep.subr.mxu0 0.0
  %609 = vmatpush1.msra.mxu0 0.0
  %610 = vmatprep.subr.mxu0 0.0
  %611 = vmatpush1.msra.mxu0 0.0
  %612 = vmatprep.subr.mxu0 0.0
  %613 = vmatpush1.msra.mxu0 0.0
  %614 = vmatprep.subr.mxu0 0.0
  %615 = vmatpush1.msra.mxu0 0.0
  %616 = vmatprep.subr.mxu0 0.0
  %617 = vmatpush1.msra.mxu0 0.0
  %618 = vmatprep.subr.mxu0 0.0
  %619 = vmatpush1.msra.mxu0 0.0
  %620 = vmatprep.subr.mxu0 0.0
  %621 = vmatpush1.msra.mxu0 0.0
  %622 = vmatprep.subr.mxu0 0.0
  %623 = vmatpush1.msra.mxu0 0.0
  %624 = vmatprep.subr.mxu0 0.0
  %625 = vmatpush1.msra.mxu0 0.0
  %626 = vmatprep.subr.mxu0 0.0
  %627 = vmatpush1.msra.mxu0 0.0
  %628 = vmatprep.subr.mxu0 0.0
  %629 = vmatpush1.msra.mxu0 0.0
  %630 = vmatprep.subr.mxu0 0.0
  %631 = vmatpush1.msra.mxu0 0.0
  %632 = vmatprep.subr.mxu0 0.0
  %633 = vmatpush1.msra.mxu0 0.0
  %634 = vmatprep.subr.mxu0 0.0
  %635 = vmatpush1.msra.mxu0 0.0
  %636 = vmatprep.subr.mxu0 0.0
  %637 = vmatpush1.msra.mxu0 0.0
  %638 = vmatprep.subr.mxu0 0.0
  %639 = vmatpush1.msra.mxu0 0.0
  %640 = vmatprep.mubr.f32.mxu0 0.0
  %641 = vmatmul.mubr.f32.gmra.mrb[0].mxu0 %v571
  %v642 = vpop.f32.mrb[0].mxu0
  %v643 = vadd.f32 0.0, %v642
  %v644 = vpop.f32.mrb[0].mxu0
  %645 = vmatprep.mubr.f32.mxu0 0.0
  %646 = vmatmul.mubr.f32.gmra.mrb[0].mxu0 %v574
  %v647 = vpop.f32.mrb[0].mxu0
  %v648 = vadd.f32 0.0, %v647
  %v649 = vpop.f32.mrb[0].mxu0
  %650 = vdwg.mxu0
  %651 = vst.msk [vmem:[#allocation2] sm:$0xff] %vm269, %v562
  %652 = vst.msk [vmem:[#allocation2 + $0x8] sm:$0xff] %vm269, %v567
  %653 = vst.msk [vmem:[#allocation2 + $0x10] sm:$0xff] %vm269, %v643
  %654 = vst.msk [vmem:[#allocation2 + $0x18] sm:$0xff] %vm269, %v648
  %655 = vrot.lane.b32.xlu0 %v162, 96
  %v656 = vpop.permute.xlu0 %655
  %657 = vrot.lane.b32.xlu0 %v168, 96
  %v658 = vpop.permute.xlu0 %657
  %659 = vrot.lane.b32.xlu0 %v164, 96
  %v660 = vpop.permute.xlu0 %659
  %661 = vrot.lane.b32.xlu0 %v170, 96
  %v662 = vpop.permute.xlu0 %661
  %v663 = vsel %vm269, %v656, 0
  %v665 = vsel %vm269, %v658, 0
  %v667 = vsel %vm269, %v660, 0
  %v669 = vsel %vm269, %v662, 0
  %671 = vmatprep.subr.mxu0 0.0
  %672 = vmatpush1.xpose.msra.mxu0 %v667
  %673 = vmatprep.subr.mxu0 0.0
  %674 = vmatpush1.xpose.msra.mxu0 %v669
  %675 = vmatprep.subr.mxu0 0.0
  %676 = vmatpush1.xpose.msra.mxu0 0.0
  %677 = vmatprep.subr.mxu0 0.0
  %678 = vmatpush1.xpose.msra.mxu0 0.0
  %679 = vmatprep.subr.mxu0 0.0
  %680 = vmatpush1.xpose.msra.mxu0 0.0
  %681 = vmatprep.subr.mxu0 0.0
  %682 = vmatpush1.xpose.msra.mxu0 0.0
  %683 = vmatprep.subr.mxu0 0.0
  %684 = vmatpush1.xpose.msra.mxu0 0.0
  %685 = vmatprep.subr.mxu0 0.0
  %686 = vmatpush1.xpose.msra.mxu0 0.0
  %687 = vmatprep.subr.mxu0 0.0
  %688 = vmatpush1.xpose.msra.mxu0 0.0
  %689 = vmatprep.subr.mxu0 0.0
  %690 = vmatpush1.xpose.msra.mxu0 0.0
  %691 = vmatprep.subr.mxu0 0.0
  %692 = vmatpush1.xpose.msra.mxu0 0.0
  %693 = vmatprep.subr.mxu0 0.0
  %694 = vmatpush1.xpose.msra.mxu0 0.0
  %695 = vmatprep.subr.mxu0 0.0
  %696 = vmatpush1.xpose.msra.mxu0 0.0
  %697 = vmatprep.subr.mxu0 0.0
  %698 = vmatpush1.xpose.msra.mxu0 0.0
  %699 = vmatprep.subr.mxu0 0.0
  %700 = vmatpush1.xpose.msra.mxu0 0.0
  %701 = vmatprep.subr.mxu0 0.0
  %702 = vmatpush1.xpose.msra.mxu0 0.0
  %703 = vmatprep.subr.mxu0 0.0
  %704 = vmatpush1.xpose.msra.mxu0 0.0
  %705 = vmatprep.subr.mxu0 0.0
  %706 = vmatpush1.xpose.msra.mxu0 0.0
  %707 = vmatprep.subr.mxu0 0.0
  %708 = vmatpush1.xpose.msra.mxu0 0.0
  %709 = vmatprep.subr.mxu0 0.0
  %710 = vmatpush1.xpose.msra.mxu0 0.0
  %711 = vmatprep.subr.mxu0 0.0
  %712 = vmatpush1.xpose.msra.mxu0 0.0
  %713 = vmatprep.subr.mxu0 0.0
  %714 = vmatpush1.xpose.msra.mxu0 0.0
  %715 = vmatprep.subr.mxu0 0.0
  %716 = vmatpush1.xpose.msra.mxu0 0.0
  %717 = vmatprep.subr.mxu0 0.0
  %718 = vmatpush1.xpose.msra.mxu0 0.0
  %719 = vmatprep.subr.mxu0 0.0
  %720 = vmatpush1.xpose.msra.mxu0 0.0
  %721 = vmatprep.subr.mxu0 0.0
  %722 = vmatpush1.xpose.msra.mxu0 0.0
  %723 = vmatprep.subr.mxu0 0.0
  %724 = vmatpush1.xpose.msra.mxu0 0.0
  %725 = vmatprep.subr.mxu0 0.0
  %726 = vmatpush1.xpose.msra.mxu0 0.0
  %727 = vmatprep.subr.mxu0 0.0
  %728 = vmatpush1.xpose.msra.mxu0 0.0
  %729 = vmatprep.subr.mxu0 0.0
  %730 = vmatpush1.xpose.msra.mxu0 0.0
  %731 = vmatprep.subr.mxu0 0.0
  %732 = vmatpush1.xpose.msra.mxu0 0.0
  %733 = vmatprep.subr.mxu0 0.0
  %734 = vmatpush1.xpose.msra.mxu0 0.0
  %735 = vmatprep.mubr.f32.mxu0 0.0
  %736 = vmatmul.mubr.f32.gmra.mrb[0].mxu0 %v663
  %v737 = vpop.f32.mrb[0].mxu0
  %v738 = vadd.f32 0.0, %v737
  %v739 = vpop.f32.mrb[0].mxu0
  %740 = vmatprep.mubr.f32.mxu0 0.0
  %741 = vmatmul.mubr.f32.gmra.mrb[0].mxu0 %v665
  %v742 = vpop.f32.mrb[0].mxu0
  %v743 = vadd.f32 0.0, %v742
  %v744 = vpop.f32.mrb[0].mxu0
  %745 = vdwg.mxu0
  %746 = vrot.lane.b32.xlu0 %v174, 96
  %v747 = vpop.permute.xlu0 %746
  %748 = vrot.lane.b32.xlu0 %v180, 96
  %v749 = vpop.permute.xlu0 %748
  %750 = vrot.lane.b32.xlu0 %v176, 96
  %v751 = vpop.permute.xlu0 %750
  %752 = vrot.lane.b32.xlu0 %v182, 96
  %v753 = vpop.permute.xlu0 %752
  %v754 = vsel %vm269, %v747, 0
  %v756 = vsel %vm269, %v749, 0
  %v758 = vsel %vm269, %v751, 0
  %v760 = vsel %vm269, %v753, 0
  %762 = vmatprep.subr.mxu0 0.0
  %763 = vmatpush1.xpose.msra.mxu0 %v758
  %764 = vmatprep.subr.mxu0 0.0
  %765 = vmatpush1.xpose.msra.mxu0 %v760
  %766 = vmatprep.subr.mxu0 0.0
  %767 = vmatpush1.xpose.msra.mxu0 0.0
  %768 = vmatprep.subr.mxu0 0.0
  %769 = vmatpush1.xpose.msra.mxu0 0.0
  %770 = vmatprep.subr.mxu0 0.0
  %771 = vmatpush1.xpose.msra.mxu0 0.0
  %772 = vmatprep.subr.mxu0 0.0
  %773 = vmatpush1.xpose.msra.mxu0 0.0
  %774 = vmatprep.subr.mxu0 0.0
  %775 = vmatpush1.xpose.msra.mxu0 0.0
  %776 = vmatprep.subr.mxu0 0.0
  %777 = vmatpush1.xpose.msra.mxu0 0.0
  %778 = vmatprep.subr.mxu0 0.0
  %779 = vmatpush1.xpose.msra.mxu0 0.0
  %780 = vmatprep.subr.mxu0 0.0
  %781 = vmatpush1.xpose.msra.mxu0 0.0
  %782 = vmatprep.subr.mxu0 0.0
  %783 = vmatpush1.xpose.msra.mxu0 0.0
  %784 = vmatprep.subr.mxu0 0.0
  %785 = vmatpush1.xpose.msra.mxu0 0.0
  %786 = vmatprep.subr.mxu0 0.0
  %787 = vmatpush1.xpose.msra.mxu0 0.0
  %788 = vmatprep.subr.mxu0 0.0
  %789 = vmatpush1.xpose.msra.mxu0 0.0
  %790 = vmatprep.subr.mxu0 0.0
  %791 = vmatpush1.xpose.msra.mxu0 0.0
  %792 = vmatprep.subr.mxu0 0.0
  %793 = vmatpush1.xpose.msra.mxu0 0.0
  %794 = vmatprep.subr.mxu0 0.0
  %795 = vmatpush1.xpose.msra.mxu0 0.0
  %796 = vmatprep.subr.mxu0 0.0
  %797 = vmatpush1.xpose.msra.mxu0 0.0
  %798 = vmatprep.subr.mxu0 0.0
  %799 = vmatpush1.xpose.msra.mxu0 0.0
  %800 = vmatprep.subr.mxu0 0.0
  %801 = vmatpush1.xpose.msra.mxu0 0.0
  %802 = vmatprep.subr.mxu0 0.0
  %803 = vmatpush1.xpose.msra.mxu0 0.0
  %804 = vmatprep.subr.mxu0 0.0
  %805 = vmatpush1.xpose.msra.mxu0 0.0
  %806 = vmatprep.subr.mxu0 0.0
  %807 = vmatpush1.xpose.msra.mxu0 0.0
  %808 = vmatprep.subr.mxu0 0.0
  %809 = vmatpush1.xpose.msra.mxu0 0.0
  %810 = vmatprep.subr.mxu0 0.0
  %811 = vmatpush1.xpose.msra.mxu0 0.0
  %812 = vmatprep.subr.mxu0 0.0
  %813 = vmatpush1.xpose.msra.mxu0 0.0
  %814 = vmatprep.subr.mxu0 0.0
  %815 = vmatpush1.xpose.msra.mxu0 0.0
  %816 = vmatprep.subr.mxu0 0.0
  %817 = vmatpush1.xpose.msra.mxu0 0.0
  %818 = vmatprep.subr.mxu0 0.0
  %819 = vmatpush1.xpose.msra.mxu0 0.0
  %820 = vmatprep.subr.mxu0 0.0
  %821 = vmatpush1.xpose.msra.mxu0 0.0
  %822 = vmatprep.subr.mxu0 0.0
  %823 = vmatpush1.xpose.msra.mxu0 0.0
  %824 = vmatprep.subr.mxu0 0.0
  %825 = vmatpush1.xpose.msra.mxu0 0.0
  %826 = vmatprep.mubr.f32.mxu0 0.0
  %827 = vmatmul.mubr.f32.gmra.mrb[0].mxu0 %v754
  %v828 = vpop.f32.mrb[0].mxu0
  %v829 = vadd.f32 0.0, %v828
  %v830 = vpop.f32.mrb[0].mxu0
  %831 = vmatprep.mubr.f32.mxu0 0.0
  %832 = vmatmul.mubr.f32.gmra.mrb[0].mxu0 %v756
  %v833 = vpop.f32.mrb[0].mxu0
  %v834 = vadd.f32 0.0, %v833
  %v835 = vpop.f32.mrb[0].mxu0
  %836 = vdwg.mxu0
  %v837 = vsel %vm444, %v738, -inf
  %838 = vmax.xlane.f32.xlu0 %v837
  %v839 = vpop.xlane.xlu0 %838
  %v840 = vsel %vm444, %v743, -inf
  %841 = vmax.xlane.f32.xlu0 %v840
  %v842 = vpop.xlane.xlu0 %841
  %v843 = vsel %vm444, %v829, -inf
  %844 = vmax.xlane.f32.xlu0 %v843
  %v845 = vpop.xlane.xlu0 %844
  %v846 = vsel %vm444, %v834, -inf
  %847 = vmax.xlane.f32.xlu0 %v846
  %v848 = vpop.xlane.xlu0 %847
  %v849 = vsub.f32 %v738, %v839
  %v850 = vsub.f32 %v743, %v842
  %v851 = vsub.f32 %v829, %v845
  %v852 = vsub.f32 %v834, %v848
  %v853 = vmul.f32 %v849, 1.442695
  %v854 = vpow.pop %v853
  %v855 = vmul.f32 %v850, 1.442695
  %v856 = vpow.pop %v855
  %v857 = vmul.f32 %v851, 1.442695
  %v858 = vpow.pop %v857
  %v859 = vmul.f32 %v852, 1.442695
  %v860 = vpow.pop %v859
  %v861 = vsel %vm444, %v854, 0.0
  %862 = vadd.xlane.f32.xlu0 %v861
  %v863 = vpop.xlane.xlu0 %862
  %v864 = vsel %vm444, %v856, 0.0
  %865 = vadd.xlane.f32.xlu0 %v864
  %v866 = vpop.xlane.xlu0 %865
  %v867 = vsel %vm444, %v858, 0.0
  %868 = vadd.xlane.f32.xlu0 %v867
  %v869 = vpop.xlane.xlu0 %868
  %v870 = vsel %vm444, %v860, 0.0
  %871 = vadd.xlane.f32.xlu0 %v870
  %v872 = vpop.xlane.xlu0 %871
  %v873 = vrcp.pop %v863
  %v874 = vrcp.pop %v866
  %v875 = vrcp.pop %v869
  %v876 = vrcp.pop %v872
  %v877 = vmul.f32 %v854, %v873
  %v878 = vmul.f32 %v856, %v874
  %v879 = vmul.f32 %v858, %v875
  %v880 = vmul.f32 %v860, %v876
  %883 = vrot.lane.b32.xlu0 %v251, 96
  %v884 = vpop.permute.xlu0 %883
  %885 = vrot.lane.b32.xlu0 %v256, 96
  %v886 = vpop.permute.xlu0 %885
  %v890 = vsel %vm444, %v877, 0
  %v893 = vsel %vm444, %v878, 0
  %895 = vmatprep.subr.mxu0 0.0
  %896 = vmatpush1.msra.mxu0 %v884
  %897 = vmatprep.subr.mxu0 0.0
  %898 = vmatpush1.msra.mxu0 %v886
  %899 = vmatprep.subr.mxu0 0.0
  %900 = vmatpush1.msra.mxu0 0.0
  %901 = vmatprep.subr.mxu0 0.0
  %902 = vmatpush1.msra.mxu0 0.0
  %903 = vmatprep.subr.mxu0 0.0
  %904 = vmatpush1.msra.mxu0 0.0
  %905 = vmatprep.subr.mxu0 0.0
  %906 = vmatpush1.msra.mxu0 0.0
  %907 = vmatprep.subr.mxu0 0.0
  %908 = vmatpush1.msra.mxu0 0.0
  %909 = vmatprep.subr.mxu0 0.0
  %910 = vmatpush1.msra.mxu0 0.0
  %911 = vmatprep.subr.mxu0 0.0
  %912 = vmatpush1.msra.mxu0 0.0
  %913 = vmatprep.subr.mxu0 0.0
  %914 = vmatpush1.msra.mxu0 0.0
  %915 = vmatprep.subr.mxu0 0.0
  %916 = vmatpush1.msra.mxu0 0.0
  %917 = vmatprep.subr.mxu0 0.0
  %918 = vmatpush1.msra.mxu0 0.0
  %919 = vmatprep.subr.mxu0 0.0
  %920 = vmatpush1.msra.mxu0 0.0
  %921 = vmatprep.subr.mxu0 0.0
  %922 = vmatpush1.msra.mxu0 0.0
  %923 = vmatprep.subr.mxu0 0.0
  %924 = vmatpush1.msra.mxu0 0.0
  %925 = vmatprep.subr.mxu0 0.0
  %926 = vmatpush1.msra.mxu0 0.0
  %927 = vmatprep.subr.mxu0 0.0
  %928 = vmatpush1.msra.mxu0 0.0
  %929 = vmatprep.subr.mxu0 0.0
  %930 = vmatpush1.msra.mxu0 0.0
  %931 = vmatprep.subr.mxu0 0.0
  %932 = vmatpush1.msra.mxu0 0.0
  %933 = vmatprep.subr.mxu0 0.0
  %934 = vmatpush1.msra.mxu0 0.0
  %935 = vmatprep.subr.mxu0 0.0
  %936 = vmatpush1.msra.mxu0 0.0
  %937 = vmatprep.subr.mxu0 0.0
  %938 = vmatpush1.msra.mxu0 0.0
  %939 = vmatprep.subr.mxu0 0.0
  %940 = vmatpush1.msra.mxu0 0.0
  %941 = vmatprep.subr.mxu0 0.0
  %942 = vmatpush1.msra.mxu0 0.0
  %943 = vmatprep.subr.mxu0 0.0
  %944 = vmatpush1.msra.mxu0 0.0
  %945 = vmatprep.subr.mxu0 0.0
  %946 = vmatpush1.msra.mxu0 0.0
  %947 = vmatprep.subr.mxu0 0.0
  %948 = vmatpush1.msra.mxu0 0.0
  %949 = vmatprep.subr.mxu0 0.0
  %950 = vmatpush1.msra.mxu0 0.0
  %951 = vmatprep.subr.mxu0 0.0
  %952 = vmatpush1.msra.mxu0 0.0
  %953 = vmatprep.subr.mxu0 0.0
  %954 = vmatpush1.msra.mxu0 0.0
  %955 = vmatprep.subr.mxu0 0.0
  %956 = vmatpush1.msra.mxu0 0.0
  %957 = vmatprep.subr.mxu0 0.0
  %958 = vmatpush1.msra.mxu0 0.0
  %959 = vmatprep.mubr.f32.mxu0 0.0
  %960 = vmatmul.mubr.f32.gmra.mrb[0].mxu0 %v890
  %v961 = vpop.f32.mrb[0].mxu0
  %v962 = vadd.f32 0.0, %v961
  %v963 = vpop.f32.mrb[0].mxu0
  %964 = vmatprep.mubr.f32.mxu0 0.0
  %965 = vmatmul.mubr.f32.gmra.mrb[0].mxu0 %v893
  %v966 = vpop.f32.mrb[0].mxu0
  %v967 = vadd.f32 0.0, %v966
  %v968 = vpop.f32.mrb[0].mxu0
  %969 = vdwg.mxu0
  %972 = vrot.lane.b32.xlu0 %v261, 96
  %v973 = vpop.permute.xlu0 %972
  %974 = vrot.lane.b32.xlu0 %v266, 96
  %v975 = vpop.permute.xlu0 %974
  %v979 = vsel %vm444, %v879, 0
  %v982 = vsel %vm444, %v880, 0
  %984 = vmatprep.subr.mxu0 0.0
  %985 = vmatpush1.msra.mxu0 %v973
  %986 = vmatprep.subr.mxu0 0.0
  %987 = vmatpush1.msra.mxu0 %v975
  %988 = vmatprep.subr.mxu0 0.0
  %989 = vmatpush1.msra.mxu0 0.0
  %990 = vmatprep.subr.mxu0 0.0
  %991 = vmatpush1.msra.mxu0 0.0
  %992 = vmatprep.subr.mxu0 0.0
  %993 = vmatpush1.msra.mxu0 0.0
  %994 = vmatprep.subr.mxu0 0.0
  %995 = vmatpush1.msra.mxu0 0.0
  %996 = vmatprep.subr.mxu0 0.0
  %997 = vmatpush1.msra.mxu0 0.0
  %998 = vmatprep.subr.mxu0 0.0
  %999 = vmatpush1.msra.mxu0 0.0
  %1000 = vmatprep.subr.mxu0 0.0
  %1001 = vmatpush1.msra.mxu0 0.0
  %1002 = vmatprep.subr.mxu0 0.0
  %1003 = vmatpush1.msra.mxu0 0.0
  %1004 = vmatprep.subr.mxu0 0.0
  %1005 = vmatpush1.msra.mxu0 0.0
  %1006 = vmatprep.subr.mxu0 0.0
  %1007 = vmatpush1.msra.mxu0 0.0
  %1008 = vmatprep.subr.mxu0 0.0
  %1009 = vmatpush1.msra.mxu0 0.0
  %1010 = vmatprep.subr.mxu0 0.0
  %1011 = vmatpush1.msra.mxu0 0.0
  %1012 = vmatprep.subr.mxu0 0.0
  %1013 = vmatpush1.msra.mxu0 0.0
  %1014 = vmatprep.subr.mxu0 0.0
  %1015 = vmatpush1.msra.mxu0 0.0
  %1016 = vmatprep.subr.mxu0 0.0
  %1017 = vmatpush1.msra.mxu0 0.0
  %1018 = vmatprep.subr.mxu0 0.0
  %1019 = vmatpush1.msra.mxu0 0.0
  %1020 = vmatprep.subr.mxu0 0.0
  %1021 = vmatpush1.msra.mxu0 0.0
  %1022 = vmatprep.subr.mxu0 0.0
  %1023 = vmatpush1.msra.mxu0 0.0
  %1024 = vmatprep.subr.mxu0 0.0
  %1025 = vmatpush1.msra.mxu0 0.0
  %1026 = vmatprep.subr.mxu0 0.0
  %1027 = vmatpush1.msra.mxu0 0.0
  %1028 = vmatprep.subr.mxu0 0.0
  %1029 = vmatpush1.msra.mxu0 0.0
  %1030 = vmatprep.subr.mxu0 0.0
  %1031 = vmatpush1.msra.mxu0 0.0
  %1032 = vmatprep.subr.mxu0 0.0
  %1033 = vmatpush1.msra.mxu0 0.0
  %1034 = vmatprep.subr.mxu0 0.0
  %1035 = vmatpush1.msra.mxu0 0.0
  %1036 = vmatprep.subr.mxu0 0.0
  %1037 = vmatpush1.msra.mxu0 0.0
  %1038 = vmatprep.subr.mxu0 0.0
  %1039 = vmatpush1.msra.mxu0 0.0
  %1040 = vmatprep.subr.mxu0 0.0
  %1041 = vmatpush1.msra.mxu0 0.0
  %1042 = vmatprep.subr.mxu0 0.0
  %1043 = vmatpush1.msra.mxu0 0.0
  %1044 = vmatprep.subr.mxu0 0.0
  %1045 = vmatpush1.msra.mxu0 0.0
  %1046 = vmatprep.subr.mxu0 0.0
  %1047 = vmatpush1.msra.mxu0 0.0
  %1048 = vmatprep.mubr.f32.mxu0 0.0
  %1049 = vmatmul.mubr.f32.gmra.mrb[0].mxu0 %v979
  %v1050 = vpop.f32.mrb[0].mxu0
  %v1051 = vadd.f32 0.0, %v1050
  %v1052 = vpop.f32.mrb[0].mxu0
  %1053 = vmatprep.mubr.f32.mxu0 0.0
  %1054 = vmatmul.mubr.f32.gmra.mrb[0].mxu0 %v982
  %v1055 = vpop.f32.mrb[0].mxu0
  %v1056 = vadd.f32 0.0, %v1055
  %v1057 = vpop.f32.mrb[0].mxu0
  %1058 = vdwg.mxu0
  %1063 = vrot.lane.b32.xlu0 %v962, 32
  %v1064 = vpop.permute.xlu0 %1063
  %1065 = vrot.lane.b32.xlu0 %v967, 32
  %v1066 = vpop.permute.xlu0 %1065
  %1067 = vrot.lane.b32.xlu0 %v1051, 32
  %v1068 = vpop.permute.xlu0 %1067
  %1069 = vrot.lane.b32.xlu0 %v1056, 32
  %v1070 = vpop.permute.xlu0 %1069
  %vm1075 = vcmask 523520
  %1076 = vst.msk [vmem:[#allocation2] sm:$0xff] %vm1075, %v1064
  %1077 = vst.msk [vmem:[#allocation2 + $0x8] sm:$0xff] %vm1075, %v1066
  %1078 = vst.msk [vmem:[#allocation2 + $0x10] sm:$0xff] %vm1075, %v1068
  %1079 = vst.msk [vmem:[#allocation2 + $0x18] sm:$0xff] %vm1075, %v1070
  %1080 = vrot.lane.b32.xlu0 %v162, 64
  %v1081 = vpop.permute.xlu0 %1080
  %1082 = vrot.lane.b32.xlu0 %v168, 64
  %v1083 = vpop.permute.xlu0 %1082
  %1084 = vrot.lane.b32.xlu0 %v164, 64
  %v1085 = vpop.permute.xlu0 %1084
  %1086 = vrot.lane.b32.xlu0 %v170, 64
  %v1087 = vpop.permute.xlu0 %1086
  %v1088 = vsel %vm269, %v1081, 0
  %v1090 = vsel %vm269, %v1083, 0
  %v1092 = vsel %vm269, %v1085, 0
  %v1094 = vsel %vm269, %v1087, 0
  %1096 = vmatprep.subr.mxu0 0.0
  %1097 = vmatpush1.xpose.msra.mxu0 %v1092
  %1098 = vmatprep.subr.mxu0 0.0
  %1099 = vmatpush1.xpose.msra.mxu0 %v1094
  %1100 = vmatprep.subr.mxu0 0.0
  %1101 = vmatpush1.xpose.msra.mxu0 0.0
  %1102 = vmatprep.subr.mxu0 0.0
  %1103 = vmatpush1.xpose.msra.mxu0 0.0
  %1104 = vmatprep.subr.mxu0 0.0
  %1105 = vmatpush1.xpose.msra.mxu0 0.0
  %1106 = vmatprep.subr.mxu0 0.0
  %1107 = vmatpush1.xpose.msra.mxu0 0.0
  %1108 = vmatprep.subr.mxu0 0.0
  %1109 = vmatpush1.xpose.msra.mxu0 0.0
  %1110 = vmatprep.subr.mxu0 0.0
  %1111 = vmatpush1.xpose.msra.mxu0 0.0
  %1112 = vmatprep.subr.mxu0 0.0
  %1113 = vmatpush1.xpose.msra.mxu0 0.0
  %1114 = vmatprep.subr.mxu0 0.0
  %1115 = vmatpush1.xpose.msra.mxu0 0.0
  %1116 = vmatprep.subr.mxu0 0.0
  %1117 = vmatpush1.xpose.msra.mxu0 0.0
  %1118 = vmatprep.subr.mxu0 0.0
  %1119 = vmatpush1.xpose.msra.mxu0 0.0
  %1120 = vmatprep.subr.mxu0 0.0
  %1121 = vmatpush1.xpose.msra.mxu0 0.0
  %1122 = vmatprep.subr.mxu0 0.0
  %1123 = vmatpush1.xpose.msra.mxu0 0.0
  %1124 = vmatprep.subr.mxu0 0.0
  %1125 = vmatpush1.xpose.msra.mxu0 0.0
  %1126 = vmatprep.subr.mxu0 0.0
  %1127 = vmatpush1.xpose.msra.mxu0 0.0
  %1128 = vmatprep.subr.mxu0 0.0
  %1129 = vmatpush1.xpose.msra.mxu0 0.0
  %1130 = vmatprep.subr.mxu0 0.0
  %1131 = vmatpush1.xpose.msra.mxu0 0.0
  %1132 = vmatprep.subr.mxu0 0.0
  %1133 = vmatpush1.xpose.msra.mxu0 0.0
  %1134 = vmatprep.subr.mxu0 0.0
  %1135 = vmatpush1.xpose.msra.mxu0 0.0
  %1136 = vmatprep.subr.mxu0 0.0
  %1137 = vmatpush1.xpose.msra.mxu0 0.0
  %1138 = vmatprep.subr.mxu0 0.0
  %1139 = vmatpush1.xpose.msra.mxu0 0.0
  %1140 = vmatprep.subr.mxu0 0.0
  %1141 = vmatpush1.xpose.msra.mxu0 0.0
  %1142 = vmatprep.subr.mxu0 0.0
  %1143 = vmatpush1.xpose.msra.mxu0 0.0
  %1144 = vmatprep.subr.mxu0 0.0
  %1145 = vmatpush1.xpose.msra.mxu0 0.0
  %1146 = vmatprep.subr.mxu0 0.0
  %1147 = vmatpush1.xpose.msra.mxu0 0.0
  %1148 = vmatprep.subr.mxu0 0.0
  %1149 = vmatpush1.xpose.msra.mxu0 0.0
  %1150 = vmatprep.subr.mxu0 0.0
  %1151 = vmatpush1.xpose.msra.mxu0 0.0
  %1152 = vmatprep.subr.mxu0 0.0
  %1153 = vmatpush1.xpose.msra.mxu0 0.0
  %1154 = vmatprep.subr.mxu0 0.0
  %1155 = vmatpush1.xpose.msra.mxu0 0.0
  %1156 = vmatprep.subr.mxu0 0.0
  %1157 = vmatpush1.xpose.msra.mxu0 0.0
  %1158 = vmatprep.subr.mxu0 0.0
  %1159 = vmatpush1.xpose.msra.mxu0 0.0
  %1160 = vmatprep.mubr.f32.mxu0 0.0
  %1161 = vmatmul.mubr.f32.gmra.mrb[0].mxu0 %v1088
  %v1162 = vpop.f32.mrb[0].mxu0
  %v1163 = vadd.f32 0.0, %v1162
  %v1164 = vpop.f32.mrb[0].mxu0
  %1165 = vmatprep.mubr.f32.mxu0 0.0
  %1166 = vmatmul.mubr.f32.gmra.mrb[0].mxu0 %v1090
  %v1167 = vpop.f32.mrb[0].mxu0
  %v1168 = vadd.f32 0.0, %v1167
  %v1169 = vpop.f32.mrb[0].mxu0
  %1170 = vdwg.mxu0
  %1171 = vrot.lane.b32.xlu0 %v174, 64
  %v1172 = vpop.permute.xlu0 %1171
  %1173 = vrot.lane.b32.xlu0 %v180, 64
  %v1174 = vpop.permute.xlu0 %1173
  %1175 = vrot.lane.b32.xlu0 %v176, 64
  %v1176 = vpop.permute.xlu0 %1175
  %1177 = vrot.lane.b32.xlu0 %v182, 64
  %v1178 = vpop.permute.xlu0 %1177
  %v1179 = vsel %vm269, %v1172, 0
  %v1181 = vsel %vm269, %v1174, 0
  %v1183 = vsel %vm269, %v1176, 0
  %v1185 = vsel %vm269, %v1178, 0
  %1187 = vmatprep.subr.mxu0 0.0
  %1188 = vmatpush1.xpose.msra.mxu0 %v1183
  %1189 = vmatprep.subr.mxu0 0.0
  %1190 = vmatpush1.xpose.msra.mxu0 %v1185
  %1191 = vmatprep.subr.mxu0 0.0
  %1192 = vmatpush1.xpose.msra.mxu0 0.0
  %1193 = vmatprep.subr.mxu0 0.0
  %1194 = vmatpush1.xpose.msra.mxu0 0.0
  %1195 = vmatprep.subr.mxu0 0.0
  %1196 = vmatpush1.xpose.msra.mxu0 0.0
  %1197 = vmatprep.subr.mxu0 0.0
  %1198 = vmatpush1.xpose.msra.mxu0 0.0
  %1199 = vmatprep.subr.mxu0 0.0
  %1200 = vmatpush1.xpose.msra.mxu0 0.0
  %1201 = vmatprep.subr.mxu0 0.0
  %1202 = vmatpush1.xpose.msra.mxu0 0.0
  %1203 = vmatprep.subr.mxu0 0.0
  %1204 = vmatpush1.xpose.msra.mxu0 0.0
  %1205 = vmatprep.subr.mxu0 0.0
  %1206 = vmatpush1.xpose.msra.mxu0 0.0
  %1207 = vmatprep.subr.mxu0 0.0
  %1208 = vmatpush1.xpose.msra.mxu0 0.0
  %1209 = vmatprep.subr.mxu0 0.0
  %1210 = vmatpush1.xpose.msra.mxu0 0.0
  %1211 = vmatprep.subr.mxu0 0.0
  %1212 = vmatpush1.xpose.msra.mxu0 0.0
  %1213 = vmatprep.subr.mxu0 0.0
  %1214 = vmatpush1.xpose.msra.mxu0 0.0
  %1215 = vmatprep.subr.mxu0 0.0
  %1216 = vmatpush1.xpose.msra.mxu0 0.0
  %1217 = vmatprep.subr.mxu0 0.0
  %1218 = vmatpush1.xpose.msra.mxu0 0.0
  %1219 = vmatprep.subr.mxu0 0.0
  %1220 = vmatpush1.xpose.msra.mxu0 0.0
  %1221 = vmatprep.subr.mxu0 0.0
  %1222 = vmatpush1.xpose.msra.mxu0 0.0
  %1223 = vmatprep.subr.mxu0 0.0
  %1224 = vmatpush1.xpose.msra.mxu0 0.0
  %1225 = vmatprep.subr.mxu0 0.0
  %1226 = vmatpush1.xpose.msra.mxu0 0.0
  %1227 = vmatprep.subr.mxu0 0.0
  %1228 = vmatpush1.xpose.msra.mxu0 0.0
  %1229 = vmatprep.subr.mxu0 0.0
  %1230 = vmatpush1.xpose.msra.mxu0 0.0
  %1231 = vmatprep.subr.mxu0 0.0
  %1232 = vmatpush1.xpose.msra.mxu0 0.0
  %1233 = vmatprep.subr.mxu0 0.0
  %1234 = vmatpush1.xpose.msra.mxu0 0.0
  %1235 = vmatprep.subr.mxu0 0.0
  %1236 = vmatpush1.xpose.msra.mxu0 0.0
  %1237 = vmatprep.subr.mxu0 0.0
  %1238 = vmatpush1.xpose.msra.mxu0 0.0
  %1239 = vmatprep.subr.mxu0 0.0
  %1240 = vmatpush1.xpose.msra.mxu0 0.0
  %1241 = vmatprep.subr.mxu0 0.0
  %1242 = vmatpush1.xpose.msra.mxu0 0.0
  %1243 = vmatprep.subr.mxu0 0.0
  %1244 = vmatpush1.xpose.msra.mxu0 0.0
  %1245 = vmatprep.subr.mxu0 0.0
  %1246 = vmatpush1.xpose.msra.mxu0 0.0
  %1247 = vmatprep.subr.mxu0 0.0
  %1248 = vmatpush1.xpose.msra.mxu0 0.0
  %1249 = vmatprep.subr.mxu0 0.0
  %1250 = vmatpush1.xpose.msra.mxu0 0.0
  %1251 = vmatprep.mubr.f32.mxu0 0.0
  %1252 = vmatmul.mubr.f32.gmra.mrb[0].mxu0 %v1179
  %v1253 = vpop.f32.mrb[0].mxu0
  %v1254 = vadd.f32 0.0, %v1253
  %v1255 = vpop.f32.mrb[0].mxu0
  %1256 = vmatprep.mubr.f32.mxu0 0.0
  %1257 = vmatmul.mubr.f32.gmra.mrb[0].mxu0 %v1181
  %v1258 = vpop.f32.mrb[0].mxu0
  %v1259 = vadd.f32 0.0, %v1258
  %v1260 = vpop.f32.mrb[0].mxu0
  %1261 = vdwg.mxu0
  %v1262 = vsel %vm444, %v1163, -inf
  %1263 = vmax.xlane.f32.xlu0 %v1262
  %v1264 = vpop.xlane.xlu0 %1263
  %v1265 = vsel %vm444, %v1168, -inf
  %1266 = vmax.xlane.f32.xlu0 %v1265
  %v1267 = vpop.xlane.xlu0 %1266
  %v1268 = vsel %vm444, %v1254, -inf
  %1269 = vmax.xlane.f32.xlu0 %v1268
  %v1270 = vpop.xlane.xlu0 %1269
  %v1271 = vsel %vm444, %v1259, -inf
  %1272 = vmax.xlane.f32.xlu0 %v1271
  %v1273 = vpop.xlane.xlu0 %1272
  %v1274 = vsub.f32 %v1163, %v1264
  %v1275 = vsub.f32 %v1168, %v1267
  %v1276 = vsub.f32 %v1254, %v1270
  %v1277 = vsub.f32 %v1259, %v1273
  %v1278 = vmul.f32 %v1274, 1.442695
  %v1279 = vpow.pop %v1278
  %v1280 = vmul.f32 %v1275, 1.442695
  %v1281 = vpow.pop %v1280
  %v1282 = vmul.f32 %v1276, 1.442695
  %v1283 = vpow.pop %v1282
  %v1284 = vmul.f32 %v1277, 1.442695
  %v1285 = vpow.pop %v1284
  %v1286 = vsel %vm444, %v1279, 0.0
  %1287 = vadd.xlane.f32.xlu0 %v1286
  %v1288 = vpop.xlane.xlu0 %1287
  %v1289 = vsel %vm444, %v1281, 0.0
  %1290 = vadd.xlane.f32.xlu0 %v1289
  %v1291 = vpop.xlane.xlu0 %1290
  %v1292 = vsel %vm444, %v1283, 0.0
  %1293 = vadd.xlane.f32.xlu0 %v1292
  %v1294 = vpop.xlane.xlu0 %1293
  %v1295 = vsel %vm444, %v1285, 0.0
  %1296 = vadd.xlane.f32.xlu0 %v1295
  %v1297 = vpop.xlane.xlu0 %1296
  %v1298 = vrcp.pop %v1288
  %v1299 = vrcp.pop %v1291
  %v1300 = vrcp.pop %v1294
  %v1301 = vrcp.pop %v1297
  %v1302 = vmul.f32 %v1279, %v1298
  %v1303 = vmul.f32 %v1281, %v1299
  %v1304 = vmul.f32 %v1283, %v1300
  %v1305 = vmul.f32 %v1285, %v1301
  %1306 = vrot.lane.b32.xlu0 %v251, 64
  %v1307 = vpop.permute.xlu0 %1306
  %1308 = vrot.lane.b32.xlu0 %v256, 64
  %v1309 = vpop.permute.xlu0 %1308
  %v1313 = vsel %vm444, %v1302, 0
  %v1316 = vsel %vm444, %v1303, 0
  %1318 = vmatprep.subr.mxu0 0.0
  %1319 = vmatpush1.msra.mxu0 %v1307
  %1320 = vmatprep.subr.mxu0 0.0
  %1321 = vmatpush1.msra.mxu0 %v1309
  %1322 = vmatprep.subr.mxu0 0.0
  %1323 = vmatpush1.msra.mxu0 0.0
  %1324 = vmatprep.subr.mxu0 0.0
  %1325 = vmatpush1.msra.mxu0 0.0
  %1326 = vmatprep.subr.mxu0 0.0
  %1327 = vmatpush1.msra.mxu0 0.0
  %1328 = vmatprep.subr.mxu0 0.0
  %1329 = vmatpush1.msra.mxu0 0.0
  %1330 = vmatprep.subr.mxu0 0.0
  %1331 = vmatpush1.msra.mxu0 0.0
  %1332 = vmatprep.subr.mxu0 0.0
  %1333 = vmatpush1.msra.mxu0 0.0
  %1334 = vmatprep.subr.mxu0 0.0
  %1335 = vmatpush1.msra.mxu0 0.0
  %1336 = vmatprep.subr.mxu0 0.0
  %1337 = vmatpush1.msra.mxu0 0.0
  %1338 = vmatprep.subr.mxu0 0.0
  %1339 = vmatpush1.msra.mxu0 0.0
  %1340 = vmatprep.subr.mxu0 0.0
  %1341 = vmatpush1.msra.mxu0 0.0
  %1342 = vmatprep.subr.mxu0 0.0
  %1343 = vmatpush1.msra.mxu0 0.0
  %1344 = vmatprep.subr.mxu0 0.0
  %1345 = vmatpush1.msra.mxu0 0.0
  %1346 = vmatprep.subr.mxu0 0.0
  %1347 = vmatpush1.msra.mxu0 0.0
  %1348 = vmatprep.subr.mxu0 0.0
  %1349 = vmatpush1.msra.mxu0 0.0
  %1350 = vmatprep.subr.mxu0 0.0
  %1351 = vmatpush1.msra.mxu0 0.0
  %1352 = vmatprep.subr.mxu0 0.0
  %1353 = vmatpush1.msra.mxu0 0.0
  %1354 = vmatprep.subr.mxu0 0.0
  %1355 = vmatpush1.msra.mxu0 0.0
  %1356 = vmatprep.subr.mxu0 0.0
  %1357 = vmatpush1.msra.mxu0 0.0
  %1358 = vmatprep.subr.mxu0 0.0
  %1359 = vmatpush1.msra.mxu0 0.0
  %1360 = vmatprep.subr.mxu0 0.0
  %1361 = vmatpush1.msra.mxu0 0.0
  %1362 = vmatprep.subr.mxu0 0.0
  %1363 = vmatpush1.msra.mxu0 0.0
  %1364 = vmatprep.subr.mxu0 0.0
  %1365 = vmatpush1.msra.mxu0 0.0
  %1366 = vmatprep.subr.mxu0 0.0
  %1367 = vmatpush1.msra.mxu0 0.0
  %1368 = vmatprep.subr.mxu0 0.0
  %1369 = vmatpush1.msra.mxu0 0.0
  %1370 = vmatprep.subr.mxu0 0.0
  %1371 = vmatpush1.msra.mxu0 0.0
  %1372 = vmatprep.subr.mxu0 0.0
  %1373 = vmatpush1.msra.mxu0 0.0
  %1374 = vmatprep.subr.mxu0 0.0
  %1375 = vmatpush1.msra.mxu0 0.0
  %1376 = vmatprep.subr.mxu0 0.0
  %1377 = vmatpush1.msra.mxu0 0.0
  %1378 = vmatprep.subr.mxu0 0.0
  %1379 = vmatpush1.msra.mxu0 0.0
  %1380 = vmatprep.subr.mxu0 0.0
  %1381 = vmatpush1.msra.mxu0 0.0
  %1382 = vmatprep.mubr.f32.mxu0 0.0
  %1383 = vmatmul.mubr.f32.gmra.mrb[0].mxu0 %v1313
  %v1384 = vpop.f32.mrb[0].mxu0
  %v1385 = vadd.f32 0.0, %v1384
  %v1386 = vpop.f32.mrb[0].mxu0
  %1387 = vmatprep.mubr.f32.mxu0 0.0
  %1388 = vmatmul.mubr.f32.gmra.mrb[0].mxu0 %v1316
  %v1389 = vpop.f32.mrb[0].mxu0
  %v1390 = vadd.f32 0.0, %v1389
  %v1391 = vpop.f32.mrb[0].mxu0
  %1392 = vdwg.mxu0
  %1393 = vrot.lane.b32.xlu0 %v261, 64
  %v1394 = vpop.permute.xlu0 %1393
  %1395 = vrot.lane.b32.xlu0 %v266, 64
  %v1396 = vpop.permute.xlu0 %1395
  %v1400 = vsel %vm444, %v1304, 0
  %v1403 = vsel %vm444, %v1305, 0
  %1405 = vmatprep.subr.mxu0 0.0
  %1406 = vmatpush1.msra.mxu0 %v1394
  %1407 = vmatprep.subr.mxu0 0.0
  %1408 = vmatpush1.msra.mxu0 %v1396
  %1409 = vmatprep.subr.mxu0 0.0
  %1410 = vmatpush1.msra.mxu0 0.0
  %1411 = vmatprep.subr.mxu0 0.0
  %1412 = vmatpush1.msra.mxu0 0.0
  %1413 = vmatprep.subr.mxu0 0.0
  %1414 = vmatpush1.msra.mxu0 0.0
  %1415 = vmatprep.subr.mxu0 0.0
  %1416 = vmatpush1.msra.mxu0 0.0
  %1417 = vmatprep.subr.mxu0 0.0
  %1418 = vmatpush1.msra.mxu0 0.0
  %1419 = vmatprep.subr.mxu0 0.0
  %1420 = vmatpush1.msra.mxu0 0.0
  %1421 = vmatprep.subr.mxu0 0.0
  %1422 = vmatpush1.msra.mxu0 0.0
  %1423 = vmatprep.subr.mxu0 0.0
  %1424 = vmatpush1.msra.mxu0 0.0
  %1425 = vmatprep.subr.mxu0 0.0
  %1426 = vmatpush1.msra.mxu0 0.0
  %1427 = vmatprep.subr.mxu0 0.0
  %1428 = vmatpush1.msra.mxu0 0.0
  %1429 = vmatprep.subr.mxu0 0.0
  %1430 = vmatpush1.msra.mxu0 0.0
  %1431 = vmatprep.subr.mxu0 0.0
  %1432 = vmatpush1.msra.mxu0 0.0
  %1433 = vmatprep.subr.mxu0 0.0
  %1434 = vmatpush1.msra.mxu0 0.0
  %1435 = vmatprep.subr.mxu0 0.0
  %1436 = vmatpush1.msra.mxu0 0.0
  %1437 = vmatprep.subr.mxu0 0.0
  %1438 = vmatpush1.msra.mxu0 0.0
  %1439 = vmatprep.subr.mxu0 0.0
  %1440 = vmatpush1.msra.mxu0 0.0
  %1441 = vmatprep.subr.mxu0 0.0
  %1442 = vmatpush1.msra.mxu0 0.0
  %1443 = vmatprep.subr.mxu0 0.0
  %1444 = vmatpush1.msra.mxu0 0.0
  %1445 = vmatprep.subr.mxu0 0.0
  %1446 = vmatpush1.msra.mxu0 0.0
  %1447 = vmatprep.subr.mxu0 0.0
  %1448 = vmatpush1.msra.mxu0 0.0
  %1449 = vmatprep.subr.mxu0 0.0
  %1450 = vmatpush1.msra.mxu0 0.0
  %1451 = vmatprep.subr.mxu0 0.0
  %1452 = vmatpush1.msra.mxu0 0.0
  %1453 = vmatprep.subr.mxu0 0.0
  %1454 = vmatpush1.msra.mxu0 0.0
  %1455 = vmatprep.subr.mxu0 0.0
  %1456 = vmatpush1.msra.mxu0 0.0
  %1457 = vmatprep.subr.mxu0 0.0
  %1458 = vmatpush1.msra.mxu0 0.0
  %1459 = vmatprep.subr.mxu0 0.0
  %1460 = vmatpush1.msra.mxu0 0.0
  %1461 = vmatprep.subr.mxu0 0.0
  %1462 = vmatpush1.msra.mxu0 0.0
  %1463 = vmatprep.subr.mxu0 0.0
  %1464 = vmatpush1.msra.mxu0 0.0
  %1465 = vmatprep.subr.mxu0 0.0
  %1466 = vmatpush1.msra.mxu0 0.0
  %1467 = vmatprep.subr.mxu0 0.0
  %1468 = vmatpush1.msra.mxu0 0.0
  %1469 = vmatprep.mubr.f32.mxu0 0.0
  %1470 = vmatmul.mubr.f32.gmra.mrb[0].mxu0 %v1400
  %v1471 = vpop.f32.mrb[0].mxu0
  %v1472 = vadd.f32 0.0, %v1471
  %v1473 = vpop.f32.mrb[0].mxu0
  %1474 = vmatprep.mubr.f32.mxu0 0.0
  %1475 = vmatmul.mubr.f32.gmra.mrb[0].mxu0 %v1403
  %v1476 = vpop.f32.mrb[0].mxu0
  %v1477 = vadd.f32 0.0, %v1476
  %v1478 = vpop.f32.mrb[0].mxu0
  %1479 = vdwg.mxu0
  %1484 = vrot.lane.b32.xlu0 %v1385, 64
  %v1485 = vpop.permute.xlu0 %1484
  %1486 = vrot.lane.b32.xlu0 %v1390, 64
  %v1487 = vpop.permute.xlu0 %1486
  %1488 = vrot.lane.b32.xlu0 %v1472, 64
  %v1489 = vpop.permute.xlu0 %1488
  %1490 = vrot.lane.b32.xlu0 %v1477, 64
  %v1491 = vpop.permute.xlu0 %1490
  %vm1496 = vcmask 785920
  %1497 = vst.msk [vmem:[#allocation2] sm:$0xff] %vm1496, %v1485
  %1498 = vst.msk [vmem:[#allocation2 + $0x8] sm:$0xff] %vm1496, %v1487
  %1499 = vst.msk [vmem:[#allocation2 + $0x10] sm:$0xff] %vm1496, %v1489
  %1500 = vst.msk [vmem:[#allocation2 + $0x18] sm:$0xff] %vm1496, %v1491
  %1501 = vrot.lane.b32.xlu0 %v162, 32
  %v1502 = vpop.permute.xlu0 %1501
  %1503 = vrot.lane.b32.xlu0 %v168, 32
  %v1504 = vpop.permute.xlu0 %1503
  %1505 = vrot.lane.b32.xlu0 %v164, 32
  %v1506 = vpop.permute.xlu0 %1505
  %1507 = vrot.lane.b32.xlu0 %v170, 32
  %v1508 = vpop.permute.xlu0 %1507
  %v1509 = vsel %vm269, %v1502, 0
  %v1511 = vsel %vm269, %v1504, 0
  %v1513 = vsel %vm269, %v1506, 0
  %v1515 = vsel %vm269, %v1508, 0
  %1517 = vmatprep.subr.mxu0 0.0
  %1518 = vmatpush1.xpose.msra.mxu0 %v1513
  %1519 = vmatprep.subr.mxu0 0.0
  %1520 = vmatpush1.xpose.msra.mxu0 %v1515
  %1521 = vmatprep.subr.mxu0 0.0
  %1522 = vmatpush1.xpose.msra.mxu0 0.0
  %1523 = vmatprep.subr.mxu0 0.0
  %1524 = vmatpush1.xpose.msra.mxu0 0.0
  %1525 = vmatprep.subr.mxu0 0.0
  %1526 = vmatpush1.xpose.msra.mxu0 0.0
  %1527 = vmatprep.subr.mxu0 0.0
  %1528 = vmatpush1.xpose.msra.mxu0 0.0
  %1529 = vmatprep.subr.mxu0 0.0
  %1530 = vmatpush1.xpose.msra.mxu0 0.0
  %1531 = vmatprep.subr.mxu0 0.0
  %1532 = vmatpush1.xpose.msra.mxu0 0.0
  %1533 = vmatprep.subr.mxu0 0.0
  %1534 = vmatpush1.xpose.msra.mxu0 0.0
  %1535 = vmatprep.subr.mxu0 0.0
  %1536 = vmatpush1.xpose.msra.mxu0 0.0
  %1537 = vmatprep.subr.mxu0 0.0
  %1538 = vmatpush1.xpose.msra.mxu0 0.0
  %1539 = vmatprep.subr.mxu0 0.0
  %1540 = vmatpush1.xpose.msra.mxu0 0.0
  %1541 = vmatprep.subr.mxu0 0.0
  %1542 = vmatpush1.xpose.msra.mxu0 0.0
  %1543 = vmatprep.subr.mxu0 0.0
  %1544 = vmatpush1.xpose.msra.mxu0 0.0
  %1545 = vmatprep.subr.mxu0 0.0
  %1546 = vmatpush1.xpose.msra.mxu0 0.0
  %1547 = vmatprep.subr.mxu0 0.0
  %1548 = vmatpush1.xpose.msra.mxu0 0.0
  %1549 = vmatprep.subr.mxu0 0.0
  %1550 = vmatpush1.xpose.msra.mxu0 0.0
  %1551 = vmatprep.subr.mxu0 0.0
  %1552 = vmatpush1.xpose.msra.mxu0 0.0
  %1553 = vmatprep.subr.mxu0 0.0
  %1554 = vmatpush1.xpose.msra.mxu0 0.0
  %1555 = vmatprep.subr.mxu0 0.0
  %1556 = vmatpush1.xpose.msra.mxu0 0.0
  %1557 = vmatprep.subr.mxu0 0.0
  %1558 = vmatpush1.xpose.msra.mxu0 0.0
  %1559 = vmatprep.subr.mxu0 0.0
  %1560 = vmatpush1.xpose.msra.mxu0 0.0
  %1561 = vmatprep.subr.mxu0 0.0
  %1562 = vmatpush1.xpose.msra.mxu0 0.0
  %1563 = vmatprep.subr.mxu0 0.0
  %1564 = vmatpush1.xpose.msra.mxu0 0.0
  %1565 = vmatprep.subr.mxu0 0.0
  %1566 = vmatpush1.xpose.msra.mxu0 0.0
  %1567 = vmatprep.subr.mxu0 0.0
  %1568 = vmatpush1.xpose.msra.mxu0 0.0
  %1569 = vmatprep.subr.mxu0 0.0
  %1570 = vmatpush1.xpose.msra.mxu0 0.0
  %1571 = vmatprep.subr.mxu0 0.0
  %1572 = vmatpush1.xpose.msra.mxu0 0.0
  %1573 = vmatprep.subr.mxu0 0.0
  %1574 = vmatpush1.xpose.msra.mxu0 0.0
  %1575 = vmatprep.subr.mxu0 0.0
  %1576 = vmatpush1.xpose.msra.mxu0 0.0
  %1577 = vmatprep.subr.mxu0 0.0
  %1578 = vmatpush1.xpose.msra.mxu0 0.0
  %1579 = vmatprep.subr.mxu0 0.0
  %1580 = vmatpush1.xpose.msra.mxu0 0.0
  %1581 = vmatprep.mubr.f32.mxu0 0.0
  %1582 = vmatmul.mubr.f32.gmra.mrb[0].mxu0 %v1509
  %v1583 = vpop.f32.mrb[0].mxu0
  %v1584 = vadd.f32 0.0, %v1583
  %v1585 = vpop.f32.mrb[0].mxu0
  %1586 = vmatprep.mubr.f32.mxu0 0.0
  %1587 = vmatmul.mubr.f32.gmra.mrb[0].mxu0 %v1511
  %v1588 = vpop.f32.mrb[0].mxu0
  %v1589 = vadd.f32 0.0, %v1588
  %v1590 = vpop.f32.mrb[0].mxu0
  %1591 = vdwg.mxu0
  %1592 = vrot.lane.b32.xlu0 %v174, 32
  %v1593 = vpop.permute.xlu0 %1592
  %1594 = vrot.lane.b32.xlu0 %v180, 32
  %v1595 = vpop.permute.xlu0 %1594
  %1596 = vrot.lane.b32.xlu0 %v176, 32
  %v1597 = vpop.permute.xlu0 %1596
  %1598 = vrot.lane.b32.xlu0 %v182, 32
  %v1599 = vpop.permute.xlu0 %1598
  %v1600 = vsel %vm269, %v1593, 0
  %v1602 = vsel %vm269, %v1595, 0
  %v1604 = vsel %vm269, %v1597, 0
  %v1606 = vsel %vm269, %v1599, 0
  %1608 = vmatprep.subr.mxu0 0.0
  %1609 = vmatpush1.xpose.msra.mxu0 %v1604
  %1610 = vmatprep.subr.mxu0 0.0
  %1611 = vmatpush1.xpose.msra.mxu0 %v1606
  %1612 = vmatprep.subr.mxu0 0.0
  %1613 = vmatpush1.xpose.msra.mxu0 0.0
  %1614 = vmatprep.subr.mxu0 0.0
  %1615 = vmatpush1.xpose.msra.mxu0 0.0
  %1616 = vmatprep.subr.mxu0 0.0
  %1617 = vmatpush1.xpose.msra.mxu0 0.0
  %1618 = vmatprep.subr.mxu0 0.0
  %1619 = vmatpush1.xpose.msra.mxu0 0.0
  %1620 = vmatprep.subr.mxu0 0.0
  %1621 = vmatpush1.xpose.msra.mxu0 0.0
  %1622 = vmatprep.subr.mxu0 0.0
  %1623 = vmatpush1.xpose.msra.mxu0 0.0
  %1624 = vmatprep.subr.mxu0 0.0
  %1625 = vmatpush1.xpose.msra.mxu0 0.0
  %1626 = vmatprep.subr.mxu0 0.0
  %1627 = vmatpush1.xpose.msra.mxu0 0.0
  %1628 = vmatprep.subr.mxu0 0.0
  %1629 = vmatpush1.xpose.msra.mxu0 0.0
  %1630 = vmatprep.subr.mxu0 0.0
  %1631 = vmatpush1.xpose.msra.mxu0 0.0
  %1632 = vmatprep.subr.mxu0 0.0
  %1633 = vmatpush1.xpose.msra.mxu0 0.0
  %1634 = vmatprep.subr.mxu0 0.0
  %1635 = vmatpush1.xpose.msra.mxu0 0.0
  %1636 = vmatprep.subr.mxu0 0.0
  %1637 = vmatpush1.xpose.msra.mxu0 0.0
  %1638 = vmatprep.subr.mxu0 0.0
  %1639 = vmatpush1.xpose.msra.mxu0 0.0
  %1640 = vmatprep.subr.mxu0 0.0
  %1641 = vmatpush1.xpose.msra.mxu0 0.0
  %1642 = vmatprep.subr.mxu0 0.0
  %1643 = vmatpush1.xpose.msra.mxu0 0.0
  %1644 = vmatprep.subr.mxu0 0.0
  %1645 = vmatpush1.xpose.msra.mxu0 0.0
  %1646 = vmatprep.subr.mxu0 0.0
  %1647 = vmatpush1.xpose.msra.mxu0 0.0
  %1648 = vmatprep.subr.mxu0 0.0
  %1649 = vmatpush1.xpose.msra.mxu0 0.0
  %1650 = vmatprep.subr.mxu0 0.0
  %1651 = vmatpush1.xpose.msra.mxu0 0.0
  %1652 = vmatprep.subr.mxu0 0.0
  %1653 = vmatpush1.xpose.msra.mxu0 0.0
  %1654 = vmatprep.subr.mxu0 0.0
  %1655 = vmatpush1.xpose.msra.mxu0 0.0
  %1656 = vmatprep.subr.mxu0 0.0
  %1657 = vmatpush1.xpose.msra.mxu0 0.0
  %1658 = vmatprep.subr.mxu0 0.0
  %1659 = vmatpush1.xpose.msra.mxu0 0.0
  %1660 = vmatprep.subr.mxu0 0.0
  %1661 = vmatpush1.xpose.msra.mxu0 0.0
  %1662 = vmatprep.subr.mxu0 0.0
  %1663 = vmatpush1.xpose.msra.mxu0 0.0
  %1664 = vmatprep.subr.mxu0 0.0
  %1665 = vmatpush1.xpose.msra.mxu0 0.0
  %1666 = vmatprep.subr.mxu0 0.0
  %1667 = vmatpush1.xpose.msra.mxu0 0.0
  %1668 = vmatprep.subr.mxu0 0.0
  %1669 = vmatpush1.xpose.msra.mxu0 0.0
  %1670 = vmatprep.subr.mxu0 0.0
  %1671 = vmatpush1.xpose.msra.mxu0 0.0
  %1672 = vmatprep.mubr.f32.mxu0 0.0
  %1673 = vmatmul.mubr.f32.gmra.mrb[0].mxu0 %v1600
  %v1674 = vpop.f32.mrb[0].mxu0
  %v1675 = vadd.f32 0.0, %v1674
  %v1676 = vpop.f32.mrb[0].mxu0
  %1677 = vmatprep.mubr.f32.mxu0 0.0
  %1678 = vmatmul.mubr.f32.gmra.mrb[0].mxu0 %v1602
  %v1679 = vpop.f32.mrb[0].mxu0
  %v1680 = vadd.f32 0.0, %v1679
  %v1681 = vpop.f32.mrb[0].mxu0
  %1682 = vdwg.mxu0
  %v1683 = vsel %vm444, %v1584, -inf
  %1684 = vmax.xlane.f32.xlu0 %v1683
  %v1685 = vpop.xlane.xlu0 %1684
  %v1686 = vsel %vm444, %v1589, -inf
  %1687 = vmax.xlane.f32.xlu0 %v1686
  %v1688 = vpop.xlane.xlu0 %1687
  %v1689 = vsel %vm444, %v1675, -inf
  %1690 = vmax.xlane.f32.xlu0 %v1689
  %v1691 = vpop.xlane.xlu0 %1690
  %v1692 = vsel %vm444, %v1680, -inf
  %1693 = vmax.xlane.f32.xlu0 %v1692
  %v1694 = vpop.xlane.xlu0 %1693
  %v1695 = vsub.f32 %v1584, %v1685
  %v1696 = vsub.f32 %v1589, %v1688
  %v1697 = vsub.f32 %v1675, %v1691
  %v1698 = vsub.f32 %v1680, %v1694
  %v1699 = vmul.f32 %v1695, 1.442695
  %v1700 = vpow.pop %v1699
  %v1701 = vmul.f32 %v1696, 1.442695
  %v1702 = vpow.pop %v1701
  %v1703 = vmul.f32 %v1697, 1.442695
  %v1704 = vpow.pop %v1703
  %v1705 = vmul.f32 %v1698, 1.442695
  %v1706 = vpow.pop %v1705
  %v1707 = vsel %vm444, %v1700, 0.0
  %1708 = vadd.xlane.f32.xlu0 %v1707
  %v1709 = vpop.xlane.xlu0 %1708
  %v1710 = vsel %vm444, %v1702, 0.0
  %1711 = vadd.xlane.f32.xlu0 %v1710
  %v1712 = vpop.xlane.xlu0 %1711
  %v1713 = vsel %vm444, %v1704, 0.0
  %1714 = vadd.xlane.f32.xlu0 %v1713
  %v1715 = vpop.xlane.xlu0 %1714
  %v1716 = vsel %vm444, %v1706, 0.0
  %1717 = vadd.xlane.f32.xlu0 %v1716
  %v1718 = vpop.xlane.xlu0 %1717
  %v1719 = vrcp.pop %v1709
  %v1720 = vrcp.pop %v1712
  %v1721 = vrcp.pop %v1715
  %v1722 = vrcp.pop %v1718
  %v1723 = vmul.f32 %v1700, %v1719
  %v1724 = vmul.f32 %v1702, %v1720
  %v1725 = vmul.f32 %v1704, %v1721
  %v1726 = vmul.f32 %v1706, %v1722
  %1727 = vrot.lane.b32.xlu0 %v251, 32
  %v1728 = vpop.permute.xlu0 %1727
  %1729 = vrot.lane.b32.xlu0 %v256, 32
  %v1730 = vpop.permute.xlu0 %1729
  %v1734 = vsel %vm444, %v1723, 0
  %v1737 = vsel %vm444, %v1724, 0
  %1739 = vmatprep.subr.mxu0 0.0
  %1740 = vmatpush1.msra.mxu0 %v1728
  %1741 = vmatprep.subr.mxu0 0.0
  %1742 = vmatpush1.msra.mxu0 %v1730
  %1743 = vmatprep.subr.mxu0 0.0
  %1744 = vmatpush1.msra.mxu0 0.0
  %1745 = vmatprep.subr.mxu0 0.0
  %1746 = vmatpush1.msra.mxu0 0.0
  %1747 = vmatprep.subr.mxu0 0.0
  %1748 = vmatpush1.msra.mxu0 0.0
  %1749 = vmatprep.subr.mxu0 0.0
  %1750 = vmatpush1.msra.mxu0 0.0
  %1751 = vmatprep.subr.mxu0 0.0
  %1752 = vmatpush1.msra.mxu0 0.0
  %1753 = vmatprep.subr.mxu0 0.0
  %1754 = vmatpush1.msra.mxu0 0.0
  %1755 = vmatprep.subr.mxu0 0.0
  %1756 = vmatpush1.msra.mxu0 0.0
  %1757 = vmatprep.subr.mxu0 0.0
  %1758 = vmatpush1.msra.mxu0 0.0
  %1759 = vmatprep.subr.mxu0 0.0
  %1760 = vmatpush1.msra.mxu0 0.0
  %1761 = vmatprep.subr.mxu0 0.0
  %1762 = vmatpush1.msra.mxu0 0.0
  %1763 = vmatprep.subr.mxu0 0.0
  %1764 = vmatpush1.msra.mxu0 0.0
  %1765 = vmatprep.subr.mxu0 0.0
  %1766 = vmatpush1.msra.mxu0 0.0
  %1767 = vmatprep.subr.mxu0 0.0
  %1768 = vmatpush1.msra.mxu0 0.0
  %1769 = vmatprep.subr.mxu0 0.0
  %1770 = vmatpush1.msra.mxu0 0.0
  %1771 = vmatprep.subr.mxu0 0.0
  %1772 = vmatpush1.msra.mxu0 0.0
  %1773 = vmatprep.subr.mxu0 0.0
  %1774 = vmatpush1.msra.mxu0 0.0
  %1775 = vmatprep.subr.mxu0 0.0
  %1776 = vmatpush1.msra.mxu0 0.0
  %1777 = vmatprep.subr.mxu0 0.0
  %1778 = vmatpush1.msra.mxu0 0.0
  %1779 = vmatprep.subr.mxu0 0.0
  %1780 = vmatpush1.msra.mxu0 0.0
  %1781 = vmatprep.subr.mxu0 0.0
  %1782 = vmatpush1.msra.mxu0 0.0
  %1783 = vmatprep.subr.mxu0 0.0
  %1784 = vmatpush1.msra.mxu0 0.0
  %1785 = vmatprep.subr.mxu0 0.0
  %1786 = vmatpush1.msra.mxu0 0.0
  %1787 = vmatprep.subr.mxu0 0.0
  %1788 = vmatpush1.msra.mxu0 0.0
  %1789 = vmatprep.subr.mxu0 0.0
  %1790 = vmatpush1.msra.mxu0 0.0
  %1791 = vmatprep.subr.mxu0 0.0
  %1792 = vmatpush1.msra.mxu0 0.0
  %1793 = vmatprep.subr.mxu0 0.0
  %1794 = vmatpush1.msra.mxu0 0.0
  %1795 = vmatprep.subr.mxu0 0.0
  %1796 = vmatpush1.msra.mxu0 0.0
  %1797 = vmatprep.subr.mxu0 0.0
  %1798 = vmatpush1.msra.mxu0 0.0
  %1799 = vmatprep.subr.mxu0 0.0
  %1800 = vmatpush1.msra.mxu0 0.0
  %1801 = vmatprep.subr.mxu0 0.0
  %1802 = vmatpush1.msra.mxu0 0.0
  %1803 = vmatprep.mubr.f32.mxu0 0.0
  %1804 = vmatmul.mubr.f32.gmra.mrb[0].mxu0 %v1734
  %v1805 = vpop.f32.mrb[0].mxu0
  %v1806 = vadd.f32 0.0, %v1805
  %v1807 = vpop.f32.mrb[0].mxu0
  %1808 = vmatprep.mubr.f32.mxu0 0.0
  %1809 = vmatmul.mubr.f32.gmra.mrb[0].mxu0 %v1737
  %v1810 = vpop.f32.mrb[0].mxu0
  %v1811 = vadd.f32 0.0, %v1810
  %v1812 = vpop.f32.mrb[0].mxu0
  %1813 = vdwg.mxu0
  %1814 = vrot.lane.b32.xlu0 %v261, 32
  %v1815 = vpop.permute.xlu0 %1814
  %1816 = vrot.lane.b32.xlu0 %v266, 32
  %v1817 = vpop.permute.xlu0 %1816
  %v1821 = vsel %vm444, %v1725, 0
  %v1824 = vsel %vm444, %v1726, 0
  %1826 = vmatprep.subr.mxu0 0.0
  %1827 = vmatpush1.msra.mxu0 %v1815
  %1828 = vmatprep.subr.mxu0 0.0
  %1829 = vmatpush1.msra.mxu0 %v1817
  %1830 = vmatprep.subr.mxu0 0.0
  %1831 = vmatpush1.msra.mxu0 0.0
  %1832 = vmatprep.subr.mxu0 0.0
  %1833 = vmatpush1.msra.mxu0 0.0
  %1834 = vmatprep.subr.mxu0 0.0
  %1835 = vmatpush1.msra.mxu0 0.0
  %1836 = vmatprep.subr.mxu0 0.0
  %1837 = vmatpush1.msra.mxu0 0.0
  %1838 = vmatprep.subr.mxu0 0.0
  %1839 = vmatpush1.msra.mxu0 0.0
  %1840 = vmatprep.subr.mxu0 0.0
  %1841 = vmatpush1.msra.mxu0 0.0
  %1842 = vmatprep.subr.mxu0 0.0
  %1843 = vmatpush1.msra.mxu0 0.0
  %1844 = vmatprep.subr.mxu0 0.0
  %1845 = vmatpush1.msra.mxu0 0.0
  %1846 = vmatprep.subr.mxu0 0.0
  %1847 = vmatpush1.msra.mxu0 0.0
  %1848 = vmatprep.subr.mxu0 0.0
  %1849 = vmatpush1.msra.mxu0 0.0
  %1850 = vmatprep.subr.mxu0 0.0
  %1851 = vmatpush1.msra.mxu0 0.0
  %1852 = vmatprep.subr.mxu0 0.0
  %1853 = vmatpush1.msra.mxu0 0.0
  %1854 = vmatprep.subr.mxu0 0.0
  %1855 = vmatpush1.msra.mxu0 0.0
  %1856 = vmatprep.subr.mxu0 0.0
  %1857 = vmatpush1.msra.mxu0 0.0
  %1858 = vmatprep.subr.mxu0 0.0
  %1859 = vmatpush1.msra.mxu0 0.0
  %1860 = vmatprep.subr.mxu0 0.0
  %1861 = vmatpush1.msra.mxu0 0.0
  %1862 = vmatprep.subr.mxu0 0.0
  %1863 = vmatpush1.msra.mxu0 0.0
  %1864 = vmatprep.subr.mxu0 0.0
  %1865 = vmatpush1.msra.mxu0 0.0
  %1866 = vmatprep.subr.mxu0 0.0
  %1867 = vmatpush1.msra.mxu0 0.0
  %1868 = vmatprep.subr.mxu0 0.0
  %1869 = vmatpush1.msra.mxu0 0.0
  %1870 = vmatprep.subr.mxu0 0.0
  %1871 = vmatpush1.msra.mxu0 0.0
  %1872 = vmatprep.subr.mxu0 0.0
  %1873 = vmatpush1.msra.mxu0 0.0
  %1874 = vmatprep.subr.mxu0 0.0
  %1875 = vmatpush1.msra.mxu0 0.0
  %1876 = vmatprep.subr.mxu0 0.0
  %1877 = vmatpush1.msra.mxu0 0.0
  %1878 = vmatprep.subr.mxu0 0.0
  %1879 = vmatpush1.msra.mxu0 0.0
  %1880 = vmatprep.subr.mxu0 0.0
  %1881 = vmatpush1.msra.mxu0 0.0
  %1882 = vmatprep.subr.mxu0 0.0
  %1883 = vmatpush1.msra.mxu0 0.0
  %1884 = vmatprep.subr.mxu0 0.0
  %1885 = vmatpush1.msra.mxu0 0.0
  %1886 = vmatprep.subr.mxu0 0.0
  %1887 = vmatpush1.msra.mxu0 0.0
  %1888 = vmatprep.subr.mxu0 0.0
  %1889 = vmatpush1.msra.mxu0 0.0
  %1890 = vmatprep.mubr.f32.mxu0 0.0
  %1891 = vmatmul.mubr.f32.gmra.mrb[0].mxu0 %v1821
  %v1892 = vpop.f32.mrb[0].mxu0
  %v1893 = vadd.f32 0.0, %v1892
  %v1894 = vpop.f32.mrb[0].mxu0
  %1895 = vmatprep.mubr.f32.mxu0 0.0
  %1896 = vmatmul.mubr.f32.gmra.mrb[0].mxu0 %v1824
  %v1897 = vpop.f32.mrb[0].mxu0
  %v1898 = vadd.f32 0.0, %v1897
  %v1899 = vpop.f32.mrb[0].mxu0
  %1900 = vdwg.mxu0
  %1905 = vrot.lane.b32.xlu0 %v1806, 96
  %v1906 = vpop.permute.xlu0 %1905
  %1907 = vrot.lane.b32.xlu0 %v1811, 96
  %v1908 = vpop.permute.xlu0 %1907
  %1909 = vrot.lane.b32.xlu0 %v1893, 96
  %v1910 = vpop.permute.xlu0 %1909
  %1911 = vrot.lane.b32.xlu0 %v1898, 96
  %v1912 = vpop.permute.xlu0 %1911
  %vm1917 = vcmask 1048320
  %1918 = vst.msk [vmem:[#allocation2] sm:$0xff] %vm1917, %v1906
  %1919 = vst.msk [vmem:[#allocation2 + $0x8] sm:$0xff] %vm1917, %v1908
  %1920 = vst.msk [vmem:[#allocation2 + $0x10] sm:$0xff] %vm1917, %v1910
  %1921 = vst.msk [vmem:[#allocation2 + $0x18] sm:$0xff] %vm1917, %v1912
  %v1922 = vld [vmem:[#allocation2] sm:$0xff]
  %v1923 = vld [vmem:[#allocation2 + $0x8] sm:$0xff]
  %v1924 = vld [vmem:[#allocation2 + $0x10] sm:$0xff]
  %v1925 = vld [vmem:[#allocation2 + $0x18] sm:$0xff]
  %v1926 = vld [vmem:[%s3] sm:$0xff]
  %v1927 = vld [vmem:[%s3 + $0x8] sm:$0xff]
  %v1928 = vld [vmem:[%s3 + $0x10] sm:$0xff]
  %v1929 = vld [vmem:[%s3 + $0x18] sm:$0xff]
  %v1930 = vld [vmem:[%s3 + $0x20] sm:$0xff]
  %v1931 = vld [vmem:[%s3 + $0x28] sm:$0xff]
  %v1932 = vld [vmem:[%s3 + $0x30] sm:$0xff]
  %v1933 = vld [vmem:[%s3 + $0x38] sm:$0xff]
  %v1934 = vld [vmem:[%s3 + $0x40] sm:$0xff]
  %v1935 = vld [vmem:[%s3 + $0x48] sm:$0xff]
  %v1936 = vld [vmem:[%s3 + $0x50] sm:$0xff]
  %v1937 = vld [vmem:[%s3 + $0x58] sm:$0xff]
  %v1938 = vld [vmem:[%s3 + $0x60] sm:$0xff]
  %v1939 = vld [vmem:[%s3 + $0x68] sm:$0xff]
  %v1940 = vld [vmem:[%s3 + $0x70] sm:$0xff]
  %v1941 = vld [vmem:[%s3 + $0x78] sm:$0xff]
  %v1942 = vld [vmem:[%s4] sm:$0x1]
  %v1944 = vlaneseq
  %v1945 = vshrl.u32 %v1944, 7
  %v1946 = vsub.s32 0, %v1945
  %v1947 = vrot.slane %v1942, %v1946
  %1949 = vmatprep.subr.mxu0 0.0
  %1950 = vmatpush1.msra.mxu0 %v1926
  %1951 = vmatprep.subr.mxu0 0.0
  %1952 = vmatpush1.msra.mxu0 %v1927
  %1953 = vmatprep.subr.mxu0 0.0
  %1954 = vmatpush1.msra.mxu0 %v1928
  %1955 = vmatprep.subr.mxu0 0.0
  %1956 = vmatpush1.msra.mxu0 %v1929
  %1957 = vmatprep.subr.mxu0 0.0
  %1958 = vmatpush1.msra.mxu0 %v1930
  %1959 = vmatprep.subr.mxu0 0.0
  %1960 = vmatpush1.msra.mxu0 %v1931
  %1961 = vmatprep.subr.mxu0 0.0
  %1962 = vmatpush1.msra.mxu0 %v1932
  %1963 = vmatprep.subr.mxu0 0.0
  %1964 = vmatpush1.msra.mxu0 %v1933
  %1965 = vmatprep.subr.mxu0 0.0
  %1966 = vmatpush1.msra.mxu0 %v1934
  %1967 = vmatprep.subr.mxu0 0.0
  %1968 = vmatpush1.msra.mxu0 %v1935
  %1969 = vmatprep.subr.mxu0 0.0
  %1970 = vmatpush1.msra.mxu0 %v1936
  %1971 = vmatprep.subr.mxu0 0.0
  %1972 = vmatpush1.msra.mxu0 %v1937
  %1973 = vmatprep.subr.mxu0 0.0
  %1974 = vmatpush1.msra.mxu0 %v1938
  %1975 = vmatprep.subr.mxu0 0.0
  %1976 = vmatpush1.msra.mxu0 %v1939
  %1977 = vmatprep.subr.mxu0 0.0
  %1978 = vmatpush1.msra.mxu0 %v1940
  %1979 = vmatprep.subr.mxu0 0.0
  %1980 = vmatpush1.msra.mxu0 %v1941
  %1981 = vmatprep.subr.mxu0 0.0
  %1982 = vmatpush1.msra.mxu0 0.0
  %1983 = vmatprep.subr.mxu0 0.0
  %1984 = vmatpush1.msra.mxu0 0.0
  %1985 = vmatprep.subr.mxu0 0.0
  %1986 = vmatpush1.msra.mxu0 0.0
  %1987 = vmatprep.subr.mxu0 0.0
  %1988 = vmatpush1.msra.mxu0 0.0
  %1989 = vmatprep.subr.mxu0 0.0
  %1990 = vmatpush1.msra.mxu0 0.0
  %1991 = vmatprep.subr.mxu0 0.0
  %1992 = vmatpush1.msra.mxu0 0.0
  %1993 = vmatprep.subr.mxu0 0.0
  %1994 = vmatpush1.msra.mxu0 0.0
  %1995 = vmatprep.subr.mxu0 0.0
  %1996 = vmatpush1.msra.mxu0 0.0
  %1997 = vmatprep.subr.mxu0 0.0
  %1998 = vmatpush1.msra.mxu0 0.0
  %1999 = vmatprep.subr.mxu0 0.0
  %2000 = vmatpush1.msra.mxu0 0.0
  %2001 = vmatprep.subr.mxu0 0.0
  %2002 = vmatpush1.msra.mxu0 0.0
  %2003 = vmatprep.subr.mxu0 0.0
  %2004 = vmatpush1.msra.mxu0 0.0
  %2005 = vmatprep.subr.mxu0 0.0
  %2006 = vmatpush1.msra.mxu0 0.0
  %2007 = vmatprep.subr.mxu0 0.0
  %2008 = vmatpush1.msra.mxu0 0.0
  %2009 = vmatprep.subr.mxu0 0.0
  %2010 = vmatpush1.msra.mxu0 0.0
  %2011 = vmatprep.subr.mxu0 0.0
  %2012 = vmatpush1.msra.mxu0 0.0
  %2013 = vmatprep.mubr.f32.mxu0 0.0
  %2014 = vmatmul.mubr.f32.gmra.mrb[0].mxu0 %v1922
  %v2015 = vpop.f32.mrb[0].mxu0
  %v2016 = vadd.f32 %v1947, %v2015
  %v2017 = vpop.f32.mrb[0].mxu0
  %2018 = vmatprep.mubr.f32.mxu0 0.0
  %2019 = vmatmul.mubr.f32.gmra.mrb[0].mxu0 %v1923
  %v2020 = vpop.f32.mrb[0].mxu0
  %v2021 = vadd.f32 %v1947, %v2020
  %v2022 = vpop.f32.mrb[0].mxu0
  %2023 = vmatprep.mubr.f32.mxu0 0.0
  %2024 = vmatmul.mubr.f32.gmra.mrb[0].mxu0 %v1924
  %v2025 = vpop.f32.mrb[0].mxu0
  %v2026 = vadd.f32 %v1947, %v2025
  %v2027 = vpop.f32.mrb[0].mxu0
  %2028 = vmatprep.mubr.f32.mxu0 0.0
  %2029 = vmatmul.mubr.f32.gmra.mrb[0].mxu0 %v1925
  %v2030 = vpop.f32.mrb[0].mxu0
  %v2031 = vadd.f32 %v1947, %v2030
  %v2032 = vpop.f32.mrb[0].mxu0
  %2033 = vdwg.mxu0
  %v2034 = vadd.f32 %v2016, %v26
  %v2035 = vadd.f32 %v2021, %v27
  %v2036 = vadd.f32 %v2026, %v28
  %v2037 = vadd.f32 %v2031, %v29
  %v2038 = vld [vmem:[%s5] sm:$0xff]
  %v2039 = vld [vmem:[%s5 + $0x8] sm:$0xff]
  %v2040 = vld [vmem:[%s5 + $0x10] sm:$0xff]
  %v2041 = vld [vmem:[%s5 + $0x18] sm:$0xff]
  %v2042 = vld [vmem:[%s5 + $0x20] sm:$0xff]
  %v2043 = vld [vmem:[%s5 + $0x28] sm:$0xff]
  %v2044 = vld [vmem:[%s5 + $0x30] sm:$0xff]
  %v2045 = vld [vmem:[%s5 + $0x38] sm:$0xff]
  %v2046 = vld [vmem:[%s5 + $0x40] sm:$0xff]
  %v2047 = vld [vmem:[%s5 + $0x48] sm:$0xff]
  %v2048 = vld [vmem:[%s5 + $0x50] sm:$0xff]
  %v2049 = vld [vmem:[%s5 + $0x58] sm:$0xff]
  %v2050 = vld [vmem:[%s5 + $0x60] sm:$0xff]
  %v2051 = vld [vmem:[%s5 + $0x68] sm:$0xff]
  %v2052 = vld [vmem:[%s5 + $0x70] sm:$0xff]
  %v2053 = vld [vmem:[%s5 + $0x78] sm:$0xff]
  %2054 = vmatprep.subr.mxu0 0.0
  %2055 = vmatpush1.msra.mxu0 %v2038
  %2056 = vmatprep.subr.mxu0 0.0
  %2057 = vmatpush1.msra.mxu0 %v2039
  %2058 = vmatprep.subr.mxu0 0.0
  %2059 = vmatpush1.msra.mxu0 %v2040
  %2060 = vmatprep.subr.mxu0 0.0
  %2061 = vmatpush1.msra.mxu0 %v2041
  %2062 = vmatprep.subr.mxu0 0.0
  %2063 = vmatpush1.msra.mxu0 %v2042
  %2064 = vmatprep.subr.mxu0 0.0
  %2065 = vmatpush1.msra.mxu0 %v2043
  %2066 = vmatprep.subr.mxu0 0.0
  %2067 = vmatpush1.msra.mxu0 %v2044
  %2068 = vmatprep.subr.mxu0 0.0
  %2069 = vmatpush1.msra.mxu0 %v2045
  %2070 = vmatprep.subr.mxu0 0.0
  %2071 = vmatpush1.msra.mxu0 %v2046
  %2072 = vmatprep.subr.mxu0 0.0
  %2073 = vmatpush1.msra.mxu0 %v2047
  %2074 = vmatprep.subr.mxu0 0.0
  %2075 = vmatpush1.msra.mxu0 %v2048
  %2076 = vmatprep.subr.mxu0 0.0
  %2077 = vmatpush1.msra.mxu0 %v2049
  %2078 = vmatprep.subr.mxu0 0.0
  %2079 = vmatpush1.msra.mxu0 %v2050
  %2080 = vmatprep.subr.mxu0 0.0
  %2081 = vmatpush1.msra.mxu0 %v2051
  %2082 = vmatprep.subr.mxu0 0.0
  %2083 = vmatpush1.msra.mxu0 %v2052
  %2084 = vmatprep.subr.mxu0 0.0
  %2085 = vmatpush1.msra.mxu0 %v2053
  %2086 = vmatprep.subr.mxu0 0.0
  %2087 = vmatpush1.msra.mxu0 0.0
  %2088 = vmatprep.subr.mxu0 0.0
  %2089 = vmatpush1.msra.mxu0 0.0
  %2090 = vmatprep.subr.mxu0 0.0
  %2091 = vmatpush1.msra.mxu0 0.0
  %2092 = vmatprep.subr.mxu0 0.0
  %2093 = vmatpush1.msra.mxu0 0.0
  %2094 = vmatprep.subr.mxu0 0.0
  %2095 = vmatpush1.msra.mxu0 0.0
  %2096 = vmatprep.subr.mxu0 0.0
  %2097 = vmatpush1.msra.mxu0 0.0
  %2098 = vmatprep.subr.mxu0 0.0
  %2099 = vmatpush1.msra.mxu0 0.0
  %2100 = vmatprep.subr.mxu0 0.0
  %2101 = vmatpush1.msra.mxu0 0.0
  %2102 = vmatprep.subr.mxu0 0.0
  %2103 = vmatpush1.msra.mxu0 0.0
  %2104 = vmatprep.subr.mxu0 0.0
  %2105 = vmatpush1.msra.mxu0 0.0
  %2106 = vmatprep.subr.mxu0 0.0
  %2107 = vmatpush1.msra.mxu0 0.0
  %2108 = vmatprep.subr.mxu0 0.0
  %2109 = vmatpush1.msra.mxu0 0.0
  %2110 = vmatprep.subr.mxu0 0.0
  %2111 = vmatpush1.msra.mxu0 0.0
  %2112 = vmatprep.subr.mxu0 0.0
  %2113 = vmatpush1.msra.mxu0 0.0
  %2114 = vmatprep.subr.mxu0 0.0
  %2115 = vmatpush1.msra.mxu0 0.0
  %2116 = vmatprep.subr.mxu0 0.0
  %2117 = vmatpush1.msra.mxu0 0.0
  %2118 = vmatprep.mubr.f32.mxu0 0.0
  %2119 = vmatmul.mubr.f32.gmra.mrb[0].mxu0 %v2034
  %v2120 = vpop.f32.mrb[0].mxu0
  %v2121 = vadd.f32 0.0, %v2120
  %v2122 = vpop.f32.mrb[0].mxu0
  %2123 = vmatprep.mubr.f32.mxu0 0.0
  %2124 = vmatmul.mubr.f32.gmra.mrb[0].mxu0 %v2035
  %v2125 = vpop.f32.mrb[0].mxu0
  %v2126 = vadd.f32 0.0, %v2125
  %v2127 = vpop.f32.mrb[0].mxu0
  %2128 = vmatprep.mubr.f32.mxu0 0.0
  %2129 = vmatmul.mubr.f32.gmra.mrb[0].mxu0 %v2036
  %v2130 = vpop.f32.mrb[0].mxu0
  %v2131 = vadd.f32 0.0, %v2130
  %v2132 = vpop.f32.mrb[0].mxu0
  %2133 = vmatprep.mubr.f32.mxu0 0.0
  %2134 = vmatmul.mubr.f32.gmra.mrb[0].mxu0 %v2037
  %v2135 = vpop.f32.mrb[0].mxu0
  %v2136 = vadd.f32 0.0, %v2135
  %v2137 = vpop.f32.mrb[0].mxu0
  %2138 = vdwg.mxu0
  %v2139 = vld [vmem:[%s6] sm:$0xff]
  %v2140 = vld [vmem:[%s6 + $0x8] sm:$0xff]
  %v2141 = vld [vmem:[%s6 + $0x10] sm:$0xff]
  %v2142 = vld [vmem:[%s6 + $0x18] sm:$0xff]
  %v2143 = vld [vmem:[%s6 + $0x20] sm:$0xff]
  %v2144 = vld [vmem:[%s6 + $0x28] sm:$0xff]
  %v2145 = vld [vmem:[%s6 + $0x30] sm:$0xff]
  %v2146 = vld [vmem:[%s6 + $0x38] sm:$0xff]
  %v2147 = vld [vmem:[%s6 + $0x40] sm:$0xff]
  %v2148 = vld [vmem:[%s6 + $0x48] sm:$0xff]
  %v2149 = vld [vmem:[%s6 + $0x50] sm:$0xff]
  %v2150 = vld [vmem:[%s6 + $0x58] sm:$0xff]
  %v2151 = vld [vmem:[%s6 + $0x60] sm:$0xff]
  %v2152 = vld [vmem:[%s6 + $0x68] sm:$0xff]
  %v2153 = vld [vmem:[%s6 + $0x70] sm:$0xff]
  %v2154 = vld [vmem:[%s6 + $0x78] sm:$0xff]
  %2155 = vmatprep.subr.mxu0 0.0
  %2156 = vmatpush1.msra.mxu0 %v2139
  %2157 = vmatprep.subr.mxu0 0.0
  %2158 = vmatpush1.msra.mxu0 %v2140
  %2159 = vmatprep.subr.mxu0 0.0
  %2160 = vmatpush1.msra.mxu0 %v2141
  %2161 = vmatprep.subr.mxu0 0.0
  %2162 = vmatpush1.msra.mxu0 %v2142
  %2163 = vmatprep.subr.mxu0 0.0
  %2164 = vmatpush1.msra.mxu0 %v2143
  %2165 = vmatprep.subr.mxu0 0.0
  %2166 = vmatpush1.msra.mxu0 %v2144
  %2167 = vmatprep.subr.mxu0 0.0
  %2168 = vmatpush1.msra.mxu0 %v2145
  %2169 = vmatprep.subr.mxu0 0.0
  %2170 = vmatpush1.msra.mxu0 %v2146
  %2171 = vmatprep.subr.mxu0 0.0
  %2172 = vmatpush1.msra.mxu0 %v2147
  %2173 = vmatprep.subr.mxu0 0.0
  %2174 = vmatpush1.msra.mxu0 %v2148
  %2175 = vmatprep.subr.mxu0 0.0
  %2176 = vmatpush1.msra.mxu0 %v2149
  %2177 = vmatprep.subr.mxu0 0.0
  %2178 = vmatpush1.msra.mxu0 %v2150
  %2179 = vmatprep.subr.mxu0 0.0
  %2180 = vmatpush1.msra.mxu0 %v2151
  %2181 = vmatprep.subr.mxu0 0.0
  %2182 = vmatpush1.msra.mxu0 %v2152
  %2183 = vmatprep.subr.mxu0 0.0
  %2184 = vmatpush1.msra.mxu0 %v2153
  %2185 = vmatprep.subr.mxu0 0.0
  %2186 = vmatpush1.msra.mxu0 %v2154
  %2187 = vmatprep.subr.mxu0 0.0
  %2188 = vmatpush1.msra.mxu0 0.0
  %2189 = vmatprep.subr.mxu0 0.0
  %2190 = vmatpush1.msra.mxu0 0.0
  %2191 = vmatprep.subr.mxu0 0.0
  %2192 = vmatpush1.msra.mxu0 0.0
  %2193 = vmatprep.subr.mxu0 0.0
  %2194 = vmatpush1.msra.mxu0 0.0
  %2195 = vmatprep.subr.mxu0 0.0
  %2196 = vmatpush1.msra.mxu0 0.0
  %2197 = vmatprep.subr.mxu0 0.0
  %2198 = vmatpush1.msra.mxu0 0.0
  %2199 = vmatprep.subr.mxu0 0.0
  %2200 = vmatpush1.msra.mxu0 0.0
  %2201 = vmatprep.subr.mxu0 0.0
  %2202 = vmatpush1.msra.mxu0 0.0
  %2203 = vmatprep.subr.mxu0 0.0
  %2204 = vmatpush1.msra.mxu0 0.0
  %2205 = vmatprep.subr.mxu0 0.0
  %2206 = vmatpush1.msra.mxu0 0.0
  %2207 = vmatprep.subr.mxu0 0.0
  %2208 = vmatpush1.msra.mxu0 0.0
  %2209 = vmatprep.subr.mxu0 0.0
  %2210 = vmatpush1.msra.mxu0 0.0
  %2211 = vmatprep.subr.mxu0 0.0
  %2212 = vmatpush1.msra.mxu0 0.0
  %2213 = vmatprep.subr.mxu0 0.0
  %2214 = vmatpush1.msra.mxu0 0.0
  %2215 = vmatprep.subr.mxu0 0.0
  %2216 = vmatpush1.msra.mxu0 0.0
  %2217 = vmatprep.subr.mxu0 0.0
  %2218 = vmatpush1.msra.mxu0 0.0
  %2219 = vmatprep.mubr.f32.mxu0 0.0
  %2220 = vmatmul.mubr.f32.gmra.mrb[0].mxu0 %v2121
  %v2221 = vpop.f32.mrb[0].mxu0
  %v2222 = vadd.f32 %v2034, %v2221
  %v2223 = vpop.f32.mrb[0].mxu0
  %2224 = vmatprep.mubr.f32.mxu0 0.0
  %2225 = vmatmul.mubr.f32.gmra.mrb[0].mxu0 %v2126
  %v2226 = vpop.f32.mrb[0].mxu0
  %v2227 = vadd.f32 %v2035, %v2226
  %v2228 = vpop.f32.mrb[0].mxu0
  %2229 = vmatprep.mubr.f32.mxu0 0.0
  %2230 = vmatmul.mubr.f32.gmra.mrb[0].mxu0 %v2131
  %v2231 = vpop.f32.mrb[0].mxu0
  %v2232 = vadd.f32 %v2036, %v2231
  %v2233 = vpop.f32.mrb[0].mxu0
  %2234 = vmatprep.mubr.f32.mxu0 0.0
  %2235 = vmatmul.mubr.f32.gmra.mrb[0].mxu0 %v2136
  %v2236 = vpop.f32.mrb[0].mxu0
  %v2237 = vadd.f32 %v2037, %v2236
  %v2238 = vpop.f32.mrb[0].mxu0
  %2239 = vdwg.mxu0
  %2240 = vst [vmem:[%s7] sm:$0xff] %v2222
  %2241 = vst [vmem:[%s7 + $0x8] sm:$0xff] %v2227
  %2242 = vst [vmem:[%s7 + $0x10] sm:$0xff] %v2232
  %2243 = vst [vmem:[%s7 + $0x18] sm:$0xff] %v2237
  // Predicated region
  $region30: #{transformer_layer_pallas.1} parent=0 // pred_check
    _
  $region31: #{transformer_layer_pallas.1} parent=0 // pred_check_branch
    %2245 = sbr.rel (0) target = $region33
  $region32: #{transformer_layer_pallas.1} parent=0 // pred_region
    _
  $region33: #{transformer_layer_pallas.1} parent=0 // pred_fallthru
    _
  // Predicated region
  $region34: #{transformer_layer_pallas.1} parent=0 // pred_check
    _
  $region35: #{transformer_layer_pallas.1} parent=0 // pred_check_branch
    %2247 = sbr.rel (0) target = $region37
  $region36: #{transformer_layer_pallas.1} parent=0 // pred_region
    _
  $region37: #{transformer_layer_pallas.1} parent=0 // pred_fallthru
    _

</llo_original>
